<compile_context>
chip_gen: v6e
topology: v6e:2x2x1
jax: 0.10.0
libtpu: 0.0.40
codegen_flags: <defaults>
</compile_context>

<pallas_src>
import functools

import jax
import jax.numpy as jnp
import numpy as np
from jax.experimental import pallas as pl
from jax.experimental.pallas import tpu as pltpu


# --------------------------- Pallas kernel ---------------------------------------
def _sigmoid(x):
    # sigmoid via tanh: runs on the EUP slot, avoids a VALU divide.
    return 0.5 * (jnp.tanh(0.5 * x) + 1.0)


def tgcn_recurrence_kernel(lx1_ref, lx2_ref, lapq_ref,
                           w1x_ref, w1h_ref, b1_ref,
                           w2x_ref, w2h_ref, b2_ref,
                           he_ref, ho_ref,
                           rhe_ref, rho_ref):
    """One GRU timestep for one batch group; hidden state lives in he/ho (resident).

    State layout ("paired node", batch packed into lanes):
      he[k, b*G + g] = h[batch b, node 2k,   unit g]   (even nodes)
      ho[k, b*G + g] = h[batch b, node 2k+1, unit g]   (odd  nodes)
    In this layout the PyTorch flat torch.chunk gate split becomes pure lane
    slicing: gates of nodes 2k / 2k+1 are the low / high G lanes of conv1's
    output row k (r half, lap rows [0,N/2)) resp. row k of the u half
    (lap rows [N/2,N)).
    """
    t = pl.program_id(1)

    @pl.when(t == 0)
    def _init():
        he_ref[...] = jnp.zeros_like(he_ref)
        ho_ref[...] = jnp.zeros_like(ho_ref)

    f32 = jnp.float32
    bf16 = jnp.bfloat16

    # Laplacian quarter blocks (static row selection x even/odd column split).
    lap_te = lapq_ref[0]   # rows [0, N/2),  even cols
    lap_to = lapq_ref[1]   # rows [0, N/2),  odd  cols
    lap_be = lapq_ref[2]   # rows [N/2, N),  even cols
    lap_bo = lapq_ref[3]   # rows [N/2, N),  odd  cols
    lap_ee = lapq_ref[4]   # even rows,      even cols
    lap_eo = lapq_ref[5]   # even rows,      odd  cols
    lap_oe = lapq_ref[6]   # odd  rows,      even cols
    lap_oo = lapq_ref[7]   # odd  rows,      odd  cols

    # (lap @ x_t) streams, hoisted to the wrapper: lx1 = [top; bottom] row
    # halves (conv1 gate rows), lx2 = [even; odd] rows (conv2 candidate rows).
    lx_top = lx1_ref[0]    # (N/2, Bp) f32
    lx_bot = lx1_ref[1]
    lx_ev = lx2_ref[0]
    lx_od = lx2_ref[1]

    w1x = w1x_ref[...]     # (1, 2G) f32   weight row multiplying the x feature
    w1h = w1h_ref[...]     # (G, 2G) bf16
    b1 = b1_ref[...]       # (1, 2G) f32
    w2x = w2x_ref[...]     # (1, G)  f32
    w2h = w2h_ref[...]     # (G, G)  bf16
    b2 = b2_ref[...]       # (1, G)  f32

    g_units = w2h.shape[0]
    bp = lx_top.shape[1]

    he = he_ref[...]       # (N/2, Bp*G) f32
    ho = ho_ref[...]
    he16 = he.astype(bf16)
    ho16 = ho.astype(bf16)

    # ---- graph_conv1: lap @ h for ALL batches at once (batch in lanes) -------
    a_top = (jnp.dot(lap_te, he16, preferred_element_type=f32)
             + jnp.dot(lap_to, ho16, preferred_element_type=f32))
    a_bot = (jnp.dot(lap_be, he16, preferred_element_type=f32)
             + jnp.dot(lap_bo, ho16, preferred_element_type=f32))

    # ---- per-batch gates + r*h (r*h goes to bf16 scratch for conv2) ----------
    u_gates = []
    for b in range(bp):
        lo = b * g_units
        hi = lo + g_units
        he_b = he[:, lo:hi]
        ho_b = ho[:, lo:hi]
        pre_r = (lx_top[:, b:b + 1] * w1x
                 + jnp.dot(a_top[:, lo:hi].astype(bf16), w1h,
                           preferred_element_type=f32) + b1)
        pre_u = (lx_bot[:, b:b + 1] * w1x
                 + jnp.dot(a_bot[:, lo:hi].astype(bf16), w1h,
                           preferred_element_type=f32) + b1)
        ru_r = _sigmoid(pre_r)                              # (N/2, 2G)
        ru_u = _sigmoid(pre_u)
        u_gates.append(ru_u)
        # flat torch.chunk split == low/high G lanes in the paired layout
        rhe_ref[:, lo:hi] = (ru_r[:, :g_units] * he_b).astype(bf16)
        rho_ref[:, lo:hi] = (ru_r[:, g_units:] * ho_b).astype(bf16)

    # ---- graph_conv2: lap @ (r*h) for ALL batches at once --------------------
    rhe = rhe_ref[...]
    rho = rho_ref[...]
    c_ev = (jnp.dot(lap_ee, rhe, preferred_element_type=f32)
            + jnp.dot(lap_eo, rho, preferred_element_type=f32))
    c_od = (jnp.dot(lap_oe, rhe, preferred_element_type=f32)
            + jnp.dot(lap_oo, rho, preferred_element_type=f32))

    # ---- per-batch candidate + GRU state update (write back into he/ho) ------
    for b in range(bp):
        lo = b * g_units
        hi = lo + g_units
        he_b = he[:, lo:hi]
        ho_b = ho[:, lo:hi]
        ru_u = u_gates[b]
        cand_e = jnp.tanh(lx_ev[:, b:b + 1] * w2x
                          + jnp.dot(c_ev[:, lo:hi].astype(bf16), w2h,
                                    preferred_element_type=f32) + b2)
        cand_o = jnp.tanh(lx_od[:, b:b + 1] * w2x
                          + jnp.dot(c_od[:, lo:hi].astype(bf16), w2h,
                                    preferred_element_type=f32) + b2)
        ue = ru_u[:, :g_units]
        uo = ru_u[:, g_units:]
        he_ref[:, lo:hi] = ue * he_b + (1.0 - ue) * cand_e
        ho_ref[:, lo:hi] = uo * ho_b + (1.0 - uo) * cand_o


# --------------------------- module-level forward ---------------------------------
def calculate_laplacian_with_self_loop(adj):
    """One-time buffer precompute (TGCNGraphConvolution.__init__)."""
    n = adj.shape[0]
    m = adj + jnp.eye(n, dtype=adj.dtype)
    d = jax.lax.rsqrt(jnp.sum(m, axis=1))
    d = jnp.where(jnp.isinf(d), 0.0, d)
    # L = D @ M^T @ D  ==  d[:,None] * M^T * d[None,:]
    return d[:, None] * m.T * d[None, :]


@functools.partial(jax.jit, static_argnames=("hidden_dim", "batch_groups"))
def tgcn_forward(inputs, lap, w1, b1, w2, b2, *, hidden_dim, batch_groups=1):
    """TGCN.forward: GRU recurrence over the sequence; returns final (B, N, G)."""
    B, T, N = inputs.shape
    G = hidden_dim
    if N % 2 != 0:
        raise ValueError("kernel assumes an even node count (torch.chunk split)")
    if B % batch_groups != 0:
        raise ValueError("batch_groups must divide the batch size")
    N2 = N // 2
    Bp = B // batch_groups
    f32, bf16 = jnp.float32, jnp.bfloat16

    # Hoist lap @ x_t for the whole sequence out of the recurrence (one XLA
    # matmul); the kernel then never does a 1-lane-wide MXU matmul.
    lx = jnp.einsum("mn,btn->tmb", lap, inputs.astype(f32))          # (T, N, B)
    lx1 = lx.reshape(T, 2, N2, B)                                    # [top; bottom] rows
    lx2 = lx.reshape(T, N2, 2, B).transpose(0, 2, 1, 3)              # [even; odd] rows

    def group_batch(a):          # (..., B) -> (batch_groups, ..., Bp)
        a = a.reshape(a.shape[:-1] + (batch_groups, Bp))
        return jnp.moveaxis(a, -2, 0)

    lx1 = group_batch(lx1)       # (GRP, T, 2, N2, Bp)
    lx2 = group_batch(lx2)

    # Laplacian quarter blocks (rows: top/bottom/even/odd, cols: even/odd), bf16.
    lapq = jnp.stack([
        lap[:N2, 0::2], lap[:N2, 1::2],
        lap[N2:, 0::2], lap[N2:, 1::2],
        lap[0::2, 0::2], lap[0::2, 1::2],
        lap[1::2, 0::2], lap[1::2, 1::2],
    ], axis=0).astype(bf16)                                          # (8, N2, N2)

    w1x = w1[0:1, :].astype(f32)          # x-feature weight row (VPU broadcast)
    w1h = w1[1:, :].astype(bf16)          # h-feature weights (MXU)
    w2x = w2[0:1, :].astype(f32)
    w2h = w2[1:, :].astype(bf16)
    b1r = b1.reshape(1, 2 * G).astype(f32)
    b2r = b2.reshape(1, G).astype(f32)

    const2 = lambda g, t: (0, 0)
    const3 = lambda g, t: (0, 0, 0)
    stream = lambda g, t: (g, t, 0, 0, 0)
    out_map = lambda g, t: (g, 0, 0)

    cost = pl.CostEstimate(
        flops=2 * T * (2 * N * N * B * G + 3 * N * B * G * G),
        transcendentals=3 * T * B * N * G,
        bytes_accessed=(4 * 2 * T * N * B + 2 * N * N + 8 * N * B * G
                        + 2 * 3 * G * G + 4 * 3 * G))

    he, ho = pl.pallas_call(
        tgcn_recurrence_kernel,
        out_shape=(jax.ShapeDtypeStruct((batch_groups, N2, Bp * G), f32),
                   jax.ShapeDtypeStruct((batch_groups, N2, Bp * G), f32)),
        grid_spec=pltpu.PrefetchScalarGridSpec(
            num_scalar_prefetch=0,
            grid=(batch_groups, T),
            in_specs=[
                pl.BlockSpec((None, None, 2, N2, Bp), stream),   # lap@x (gate rows)
                pl.BlockSpec((None, None, 2, N2, Bp), stream),   # lap@x (cand rows)
                pl.BlockSpec((8, N2, N2), const3),               # lap quarters (resident)
                pl.BlockSpec((1, 2 * G), const2),                # w1 x-row
                pl.BlockSpec((G, 2 * G), const2),                # w1 h-rows
                pl.BlockSpec((1, 2 * G), const2),                # b1
                pl.BlockSpec((1, G), const2),                    # w2 x-row
                pl.BlockSpec((G, G), const2),                    # w2 h-rows
                pl.BlockSpec((1, G), const2),                    # b2
            ],
            out_specs=(
                pl.BlockSpec((None, N2, Bp * G), out_map),       # h (even nodes)
                pl.BlockSpec((None, N2, Bp * G), out_map),       # h (odd nodes)
            ),
            scratch_shapes=[pltpu.VMEM((N2, Bp * G), bf16),      # r*h (even nodes)
                            pltpu.VMEM((N2, Bp * G), bf16)]),    # r*h (odd nodes)
        compiler_params=pltpu.CompilerParams(
            dimension_semantics=("parallel", "arbitrary"),
            vmem_limit_bytes=64 * 1024 * 1024),
        cost_estimate=cost,
    )(lx1, lx2, lapq, w1x, w1h, b1r, w2x, w2h, b2r)

    # Un-permute paired/even-odd state layout back to (B, N, G).
    def ungroup(a):              # (GRP, N2, Bp*G) -> (B, N2, G)
        a = a.reshape(batch_groups, N2, Bp, G)
        return jnp.transpose(a, (0, 2, 1, 3)).reshape(B, N2, G)

    h_even = ungroup(he)
    h_odd = ungroup(ho)
    return jnp.stack([h_even, h_odd], axis=2).reshape(B, N, G)


# --------------------------- pure-JAX reference (mirrors PyTorch) -----------------
def _ref_laplacian(adj):
    n = adj.shape[0]
    m = adj + jnp.eye(n, dtype=adj.dtype)
    row_sum = m.sum(1)
    d = row_sum ** -0.5
    d = jnp.where(jnp.isinf(d), 0.0, d)
    dm = jnp.diag(d)
    return (m @ dm).T @ dm


def _ref_graph_conv(lap, weights, biases, x, h_flat, G, O):
    B, N = x.shape
    cat = jnp.concatenate([x.reshape(B, N, 1), h_flat.reshape(B, N, G)], axis=2)
    cat = jnp.swapaxes(cat, 0, 1)                 # (N, B, F)
    cat = jnp.swapaxes(cat, 1, 2)                 # (N, F, B)
    cat = cat.reshape(N, (G + 1) * B)
    atc = lap @ cat
    atc = atc.reshape(N, G + 1, B)
    atc = jnp.swapaxes(atc, 0, 2)                 # (B, F, N)
    atc = jnp.swapaxes(atc, 1, 2)                 # (B, N, F)
    atc = atc.reshape(B * N, G + 1)
    out = atc @ weights + biases
    return out.reshape(B, N * O)


def tgcn_reference(inputs, adj, w1, b1, w2, b2, G):
    B, T, N = inputs.shape
    lap = _ref_laplacian(adj)
    h = jnp.zeros((B, N * G), jnp.float32)
    for i in range(T):
        x_t = inputs[:, i, :]
        conc = jax.nn.sigmoid(_ref_graph_conv(lap, w1, b1, x_t, h, G, 2 * G))
        r, u = jnp.split(conc, 2, axis=1)
        c = jnp.tanh(_ref_graph_conv(lap, w2, b2, x_t, r * h, G, G))
        h = u * h + (1.0 - u) * c
    return h.reshape(B, N, G)


# --------------------------- demo / self-check ------------------------------------
if __name__ == "__main__":
    B, T, N = 2, 8, 16          # batch, sequence length, num nodes
    hidden_dim = 32             # GRU hidden units per node
    F = hidden_dim + 1

    key = jax.random.PRNGKey(0)
    k_adj, k_x, k_w1, k_w2 = jax.random.split(key, 4)

    # non-negative adjacency so row sums stay positive (typical usage)
    adj = jax.random.uniform(k_adj, (N, N), dtype=jnp.float32)
    inputs = jax.random.normal(k_x, (B, T, N), dtype=jnp.float32)

    def xavier(k, shape):
        bound = float(np.sqrt(6.0 / (shape[0] + shape[1])))
        return jax.random.uniform(k, shape, jnp.float32, -bound, bound)

    w1 = xavier(k_w1, (F, 2 * hidden_dim))                       # graph_conv1 weights
    b1 = jnp.full((2 * hidden_dim,), 1.0, jnp.float32)           # bias init 1.0
    w2 = xavier(k_w2, (F, hidden_dim))                           # graph_conv2 weights
    b2 = jnp.zeros((hidden_dim,), jnp.float32)                   # bias init 0.0

    # module buffer (one-time init), then the fused recurrent forward
    lap = calculate_laplacian_with_self_loop(adj)

    out = tgcn_forward(inputs, lap, w1, b1, w2, b2,
                       hidden_dim=hidden_dim, batch_groups=2)
    out = jax.block_until_ready(out)
    assert out.shape == (B, N, hidden_dim)

    ref = tgcn_reference(inputs, adj, w1, b1, w2, b2, hidden_dim)
    # bf16 MXU operands in the kernel -> loosened tolerance vs the f32 reference
    np.testing.assert_allclose(np.asarray(out), np.asarray(ref),
                               rtol=3e-2, atol=3e-2)
    print("KERNEL_OK")
</pallas_src>

<mosaic_0001>
module attributes {stable_mosaic.version = 11 : i64} {
  func.func @tgcn_recurrence_kernel(%arg0: i32, %arg1: i32, %arg2: memref<1x1x2x8x1xf32, #tpu.memory_space<vmem>>, %arg3: memref<1x1x2x8x1xf32, #tpu.memory_space<vmem>>, %arg4: memref<8x8x8xbf16, #tpu.memory_space<vmem>>, %arg5: memref<1x64xf32, #tpu.memory_space<vmem>>, %arg6: memref<32x64xbf16, #tpu.memory_space<vmem>>, %arg7: memref<1x64xf32, #tpu.memory_space<vmem>>, %arg8: memref<1x32xf32, #tpu.memory_space<vmem>>, %arg9: memref<32x32xbf16, #tpu.memory_space<vmem>>, %arg10: memref<1x32xf32, #tpu.memory_space<vmem>>, %arg11: memref<1x8x32xf32, #tpu.memory_space<vmem>>, %arg12: memref<1x8x32xf32, #tpu.memory_space<vmem>>, %arg13: memref<8x32xbf16, #tpu.memory_space<vmem>>, %arg14: memref<8x32xbf16, #tpu.memory_space<vmem>>) attributes {dimension_semantics = [#tpu.dimension_semantics<parallel>, #tpu.dimension_semantics<arbitrary>], iteration_bounds = array<i64: 2, 8>, scalar_prefetch = 0 : i64, scratch_operands = 2 : i64, tpu.core_type = #tpu.core_type<tc>, window_params = [{transform_indices = @transform_0, window_bounds = array<i64: 1, 1, 2, 8, 1>}, {transform_indices = @transform_1, window_bounds = array<i64: 1, 1, 2, 8, 1>}, {pipeline_mode = #tpu.pipeline_mode<synchronous>, transform_indices = @transform_2, window_bounds = array<i64: 8, 8, 8>}, {pipeline_mode = #tpu.pipeline_mode<synchronous>, transform_indices = @transform_3, window_bounds = array<i64: 1, 64>}, {pipeline_mode = #tpu.pipeline_mode<synchronous>, transform_indices = @transform_4, window_bounds = array<i64: 32, 64>}, {pipeline_mode = #tpu.pipeline_mode<synchronous>, transform_indices = @transform_5, window_bounds = array<i64: 1, 64>}, {pipeline_mode = #tpu.pipeline_mode<synchronous>, transform_indices = @transform_6, window_bounds = array<i64: 1, 32>}, {pipeline_mode = #tpu.pipeline_mode<synchronous>, transform_indices = @transform_7, window_bounds = array<i64: 32, 32>}, {pipeline_mode = #tpu.pipeline_mode<synchronous>, transform_indices = @transform_8, window_bounds = array<i64: 1, 32>}, {transform_indices = @transform_9, window_bounds = array<i64: 1, 8, 32>}, {transform_indices = @transform_10, window_bounds = array<i64: 1, 8, 32>}]} {
    %c0_i32 = arith.constant 0 : i32
    %0 = arith.cmpi eq, %arg1, %c0_i32 : i32
    %1 = arith.extui %0 : i1 to i32
    %c0_i32_0 = arith.constant 0 : i32
    %2 = arith.cmpi ne, %1, %c0_i32_0 : i32
    scf.if %2 {
      %cst_88 = arith.constant 0.000000e+00 : f32
      %127 = vector.broadcast %cst_88 : f32 to vector<8x32xf32>
      %c0_89 = arith.constant 0 : index
      %c0_90 = arith.constant 0 : index
      %c0_91 = arith.constant 0 : index
      %128 = vector.load %arg11[%c0_89, %c0_90, %c0_91] : memref<1x8x32xf32, #tpu.memory_space<vmem>>, vector<1x8x32xf32>
      %129 = vector.shape_cast %128 : vector<1x8x32xf32> to vector<8x32xf32>
      %130 = vector.shape_cast %127 : vector<8x32xf32> to vector<1x8x32xf32>
      tpu.vector_store %arg11[%c0_89, %c0_90, %c0_91], %130 {strides = array<i32>} : memref<1x8x32xf32, #tpu.memory_space<vmem>>, vector<1x8x32xf32>,
      %cst_92 = arith.constant 0.000000e+00 : f32
      %131 = vector.broadcast %cst_92 : f32 to vector<8x32xf32>
      %c0_93 = arith.constant 0 : index
      %c0_94 = arith.constant 0 : index
      %c0_95 = arith.constant 0 : index
      %132 = vector.load %arg12[%c0_93, %c0_94, %c0_95] : memref<1x8x32xf32, #tpu.memory_space<vmem>>, vector<1x8x32xf32>
      %133 = vector.shape_cast %132 : vector<1x8x32xf32> to vector<8x32xf32>
      %134 = vector.shape_cast %131 : vector<8x32xf32> to vector<1x8x32xf32>
      tpu.vector_store %arg12[%c0_93, %c0_94, %c0_95], %134 {strides = array<i32>} : memref<1x8x32xf32, #tpu.memory_space<vmem>>, vector<1x8x32xf32>,
    } else {
    }
    %c0 = arith.constant 0 : index
    %c0_1 = arith.constant 0 : index
    %c0_2 = arith.constant 0 : index
    %3 = vector.load %arg4[%c0, %c0_1, %c0_2] : memref<8x8x8xbf16, #tpu.memory_space<vmem>>, vector<1x8x8xbf16>
    %4 = vector.shape_cast %3 : vector<1x8x8xbf16> to vector<8x8xbf16>
    %c1 = arith.constant 1 : index
    %c0_3 = arith.constant 0 : index
    %c0_4 = arith.constant 0 : index
    %5 = vector.load %arg4[%c1, %c0_3, %c0_4] : memref<8x8x8xbf16, #tpu.memory_space<vmem>>, vector<1x8x8xbf16>
    %6 = vector.shape_cast %5 : vector<1x8x8xbf16> to vector<8x8xbf16>
    %c2 = arith.constant 2 : index
    %c0_5 = arith.constant 0 : index
    %c0_6 = arith.constant 0 : index
    %7 = vector.load %arg4[%c2, %c0_5, %c0_6] : memref<8x8x8xbf16, #tpu.memory_space<vmem>>, vector<1x8x8xbf16>
    %8 = vector.shape_cast %7 : vector<1x8x8xbf16> to vector<8x8xbf16>
    %c3 = arith.constant 3 : index
    %c0_7 = arith.constant 0 : index
    %c0_8 = arith.constant 0 : index
    %9 = vector.load %arg4[%c3, %c0_7, %c0_8] : memref<8x8x8xbf16, #tpu.memory_space<vmem>>, vector<1x8x8xbf16>
    %10 = vector.shape_cast %9 : vector<1x8x8xbf16> to vector<8x8xbf16>
    %c4 = arith.constant 4 : index
    %c0_9 = arith.constant 0 : index
    %c0_10 = arith.constant 0 : index
    %11 = vector.load %arg4[%c4, %c0_9, %c0_10] : memref<8x8x8xbf16, #tpu.memory_space<vmem>>, vector<1x8x8xbf16>
    %12 = vector.shape_cast %11 : vector<1x8x8xbf16> to vector<8x8xbf16>
    %c5 = arith.constant 5 : index
    %c0_11 = arith.constant 0 : index
    %c0_12 = arith.constant 0 : index
    %13 = vector.load %arg4[%c5, %c0_11, %c0_12] : memref<8x8x8xbf16, #tpu.memory_space<vmem>>, vector<1x8x8xbf16>
    %14 = vector.shape_cast %13 : vector<1x8x8xbf16> to vector<8x8xbf16>
    %c6 = arith.constant 6 : index
    %c0_13 = arith.constant 0 : index
    %c0_14 = arith.constant 0 : index
    %15 = vector.load %arg4[%c6, %c0_13, %c0_14] : memref<8x8x8xbf16, #tpu.memory_space<vmem>>, vector<1x8x8xbf16>
    %16 = vector.shape_cast %15 : vector<1x8x8xbf16> to vector<8x8xbf16>
    %c7 = arith.constant 7 : index
    %c0_15 = arith.constant 0 : index
    %c0_16 = arith.constant 0 : index
    %17 = vector.load %arg4[%c7, %c0_15, %c0_16] : memref<8x8x8xbf16, #tpu.memory_space<vmem>>, vector<1x8x8xbf16>
    %18 = vector.shape_cast %17 : vector<1x8x8xbf16> to vector<8x8xbf16>
    %c0_17 = arith.constant 0 : index
    %c0_18 = arith.constant 0 : index
    %c0_19 = arith.constant 0 : index
    %c0_20 = arith.constant 0 : index
    %c0_21 = arith.constant 0 : index
    %19 = vector.load %arg2[%c0_17, %c0_18, %c0_19, %c0_20, %c0_21] : memref<1x1x2x8x1xf32, #tpu.memory_space<vmem>>, vector<1x1x1x8x1xf32>
    %20 = vector.shape_cast %19 : vector<1x1x1x8x1xf32> to vector<8x1xf32>
    %c0_22 = arith.constant 0 : index
    %c0_23 = arith.constant 0 : index
    %c1_24 = arith.constant 1 : index
    %c0_25 = arith.constant 0 : index
    %c0_26 = arith.constant 0 : index
    %21 = vector.load %arg2[%c0_22, %c0_23, %c1_24, %c0_25, %c0_26] : memref<1x1x2x8x1xf32, #tpu.memory_space<vmem>>, vector<1x1x1x8x1xf32>
    %22 = vector.shape_cast %21 : vector<1x1x1x8x1xf32> to vector<8x1xf32>
    %c0_27 = arith.constant 0 : index
    %c0_28 = arith.constant 0 : index
    %c0_29 = arith.constant 0 : index
    %c0_30 = arith.constant 0 : index
    %c0_31 = arith.constant 0 : index
    %23 = vector.load %arg3[%c0_27, %c0_28, %c0_29, %c0_30, %c0_31] : memref<1x1x2x8x1xf32, #tpu.memory_space<vmem>>, vector<1x1x1x8x1xf32>
    %24 = vector.shape_cast %23 : vector<1x1x1x8x1xf32> to vector<8x1xf32>
    %c0_32 = arith.constant 0 : index
    %c0_33 = arith.constant 0 : index
    %c1_34 = arith.constant 1 : index
    %c0_35 = arith.constant 0 : index
    %c0_36 = arith.constant 0 : index
    %25 = vector.load %arg3[%c0_32, %c0_33, %c1_34, %c0_35, %c0_36] : memref<1x1x2x8x1xf32, #tpu.memory_space<vmem>>, vector<1x1x1x8x1xf32>
    %26 = vector.shape_cast %25 : vector<1x1x1x8x1xf32> to vector<8x1xf32>
    %c0_37 = arith.constant 0 : index
    %c0_38 = arith.constant 0 : index
    %27 = vector.load %arg5[%c0_37, %c0_38] : memref<1x64xf32, #tpu.memory_space<vmem>>, vector<1x64xf32>
    %c0_39 = arith.constant 0 : index
    %c0_40 = arith.constant 0 : index
    %28 = vector.load %arg6[%c0_39, %c0_40] : memref<32x64xbf16, #tpu.memory_space<vmem>>, vector<32x64xbf16>
    %c0_41 = arith.constant 0 : index
    %c0_42 = arith.constant 0 : index
    %29 = vector.load %arg7[%c0_41, %c0_42] : memref<1x64xf32, #tpu.memory_space<vmem>>, vector<1x64xf32>
    %c0_43 = arith.constant 0 : index
    %c0_44 = arith.constant 0 : index
    %30 = vector.load %arg8[%c0_43, %c0_44] : memref<1x32xf32, #tpu.memory_space<vmem>>, vector<1x32xf32>
    %c0_45 = arith.constant 0 : index
    %c0_46 = arith.constant 0 : index
    %31 = vector.load %arg9[%c0_45, %c0_46] : memref<32x32xbf16, #tpu.memory_space<vmem>>, vector<32x32xbf16>
    %c0_47 = arith.constant 0 : index
    %c0_48 = arith.constant 0 : index
    %32 = vector.load %arg10[%c0_47, %c0_48] : memref<1x32xf32, #tpu.memory_space<vmem>>, vector<1x32xf32>
    %c0_49 = arith.constant 0 : index
    %c0_50 = arith.constant 0 : index
    %c0_51 = arith.constant 0 : index
    %33 = vector.load %arg11[%c0_49, %c0_50, %c0_51] : memref<1x8x32xf32, #tpu.memory_space<vmem>>, vector<1x8x32xf32>
    %34 = vector.shape_cast %33 : vector<1x8x32xf32> to vector<8x32xf32>
    %c0_52 = arith.constant 0 : index
    %c0_53 = arith.constant 0 : index
    %c0_54 = arith.constant 0 : index
    %35 = vector.load %arg12[%c0_52, %c0_53, %c0_54] : memref<1x8x32xf32, #tpu.memory_space<vmem>>, vector<1x8x32xf32>
    %36 = vector.shape_cast %35 : vector<1x8x32xf32> to vector<8x32xf32>
    %37 = arith.truncf %34 : vector<8x32xf32> to vector<8x32xbf16>
    %38 = arith.truncf %36 : vector<8x32xf32> to vector<8x32xbf16>
    %cst = arith.constant dense<0.000000e+00> : vector<8x32xf32>
    %39 = tpu.matmul %4, %37, %cst {dimension_numbers = #tpu.dot_dimension_numbers<[1], [0], [0], [1], [0, 0, 1, 1], [], []>} : vector<8x8xbf16>, vector<8x32xbf16>, vector<8x32xf32> -> vector<8x32xf32>
    %cst_55 = arith.constant dense<0.000000e+00> : vector<8x32xf32>
    %40 = tpu.matmul %6, %38, %cst_55 {dimension_numbers = #tpu.dot_dimension_numbers<[1], [0], [0], [1], [0, 0, 1, 1], [], []>} : vector<8x8xbf16>, vector<8x32xbf16>, vector<8x32xf32> -> vector<8x32xf32>
    %41 = arith.addf %39, %40 : vector<8x32xf32>
    %cst_56 = arith.constant dense<0.000000e+00> : vector<8x32xf32>
    %42 = tpu.matmul %8, %37, %cst_56 {dimension_numbers = #tpu.dot_dimension_numbers<[1], [0], [0], [1], [0, 0, 1, 1], [], []>} : vector<8x8xbf16>, vector<8x32xbf16>, vector<8x32xf32> -> vector<8x32xf32>
    %cst_57 = arith.constant dense<0.000000e+00> : vector<8x32xf32>
    %43 = tpu.matmul %10, %38, %cst_57 {dimension_numbers = #tpu.dot_dimension_numbers<[1], [0], [0], [1], [0, 0, 1, 1], [], []>} : vector<8x8xbf16>, vector<8x32xbf16>, vector<8x32xf32> -> vector<8x32xf32>
    %44 = arith.addf %42, %43 : vector<8x32xf32>
    %45 = vector.broadcast %20 : vector<8x1xf32> to vector<8x64xf32>
    %46 = vector.broadcast %27 : vector<1x64xf32> to vector<8x64xf32>
    %47 = arith.mulf %45, %46 : vector<8x64xf32>
    %48 = arith.truncf %41 : vector<8x32xf32> to vector<8x32xbf16>
    %cst_58 = arith.constant dense<0.000000e+00> : vector<8x64xf32>
    %49 = tpu.matmul %48, %28, %cst_58 {dimension_numbers = #tpu.dot_dimension_numbers<[1], [0], [0], [1], [0, 0, 1, 1], [], []>} : vector<8x32xbf16>, vector<32x64xbf16>, vector<8x64xf32> -> vector<8x64xf32>
    %50 = arith.addf %47, %49 : vector<8x64xf32>
    %51 = vector.broadcast %29 : vector<1x64xf32> to vector<8x64xf32>
    %52 = arith.addf %50, %51 : vector<8x64xf32>
    %53 = vector.broadcast %22 : vector<8x1xf32> to vector<8x64xf32>
    %54 = vector.broadcast %27 : vector<1x64xf32> to vector<8x64xf32>
    %55 = arith.mulf %53, %54 : vector<8x64xf32>
    %56 = arith.truncf %44 : vector<8x32xf32> to vector<8x32xbf16>
    %cst_59 = arith.constant dense<0.000000e+00> : vector<8x64xf32>
    %57 = tpu.matmul %56, %28, %cst_59 {dimension_numbers = #tpu.dot_dimension_numbers<[1], [0], [0], [1], [0, 0, 1, 1], [], []>} : vector<8x32xbf16>, vector<32x64xbf16>, vector<8x64xf32> -> vector<8x64xf32>
    %58 = arith.addf %55, %57 : vector<8x64xf32>
    %59 = vector.broadcast %29 : vector<1x64xf32> to vector<8x64xf32>
    %60 = arith.addf %58, %59 : vector<8x64xf32>
    %cst_60 = arith.constant 5.000000e-01 : f32
    %61 = vector.broadcast %cst_60 : f32 to vector<8x64xf32>
    %62 = arith.mulf %61, %52 : vector<8x64xf32>
    %63 = math.tanh %62 : vector<8x64xf32>
    %cst_61 = arith.constant 1.000000e+00 : f32
    %64 = vector.broadcast %cst_61 : f32 to vector<8x64xf32>
    %65 = arith.addf %63, %64 : vector<8x64xf32>
    %cst_62 = arith.constant 5.000000e-01 : f32
    %66 = vector.broadcast %cst_62 : f32 to vector<8x64xf32>
    %67 = arith.mulf %66, %65 : vector<8x64xf32>
    %cst_63 = arith.constant 5.000000e-01 : f32
    %68 = vector.broadcast %cst_63 : f32 to vector<8x64xf32>
    %69 = arith.mulf %68, %60 : vector<8x64xf32>
    %70 = math.tanh %69 : vector<8x64xf32>
    %cst_64 = arith.constant 1.000000e+00 : f32
    %71 = vector.broadcast %cst_64 : f32 to vector<8x64xf32>
    %72 = arith.addf %70, %71 : vector<8x64xf32>
    %cst_65 = arith.constant 5.000000e-01 : f32
    %73 = vector.broadcast %cst_65 : f32 to vector<8x64xf32>
    %74 = arith.mulf %73, %72 : vector<8x64xf32>
    %75 = vector.extract_strided_slice %67 {offsets = [0, 0], sizes = [8, 32], strides = [1, 1]} : vector<8x64xf32> to vector<8x32xf32>
    %76 = arith.mulf %75, %34 : vector<8x32xf32>
    %77 = arith.truncf %76 : vector<8x32xf32> to vector<8x32xbf16>
    %c0_66 = arith.constant 0 : index
    %c0_67 = arith.constant 0 : index
    %78 = vector.load %arg13[%c0_66, %c0_67] : memref<8x32xbf16, #tpu.memory_space<vmem>>, vector<8x32xbf16>
    tpu.vector_store %arg13[%c0_66, %c0_67], %77 {strides = array<i32>} : memref<8x32xbf16, #tpu.memory_space<vmem>>, vector<8x32xbf16>,
    %79 = vector.extract_strided_slice %67 {offsets = [0, 32], sizes = [8, 32], strides = [1, 1]} : vector<8x64xf32> to vector<8x32xf32>
    %80 = arith.mulf %79, %36 : vector<8x32xf32>
    %81 = arith.truncf %80 : vector<8x32xf32> to vector<8x32xbf16>
    %c0_68 = arith.constant 0 : index
    %c0_69 = arith.constant 0 : index
    %82 = vector.load %arg14[%c0_68, %c0_69] : memref<8x32xbf16, #tpu.memory_space<vmem>>, vector<8x32xbf16>
    tpu.vector_store %arg14[%c0_68, %c0_69], %81 {strides = array<i32>} : memref<8x32xbf16, #tpu.memory_space<vmem>>, vector<8x32xbf16>,
    %c0_70 = arith.constant 0 : index
    %c0_71 = arith.constant 0 : index
    %83 = vector.load %arg13[%c0_70, %c0_71] : memref<8x32xbf16, #tpu.memory_space<vmem>>, vector<8x32xbf16>
    %c0_72 = arith.constant 0 : index
    %c0_73 = arith.constant 0 : index
    %84 = vector.load %arg14[%c0_72, %c0_73] : memref<8x32xbf16, #tpu.memory_space<vmem>>, vector<8x32xbf16>
    %cst_74 = arith.constant dense<0.000000e+00> : vector<8x32xf32>
    %85 = tpu.matmul %12, %83, %cst_74 {dimension_numbers = #tpu.dot_dimension_numbers<[1], [0], [0], [1], [0, 0, 1, 1], [], []>} : vector<8x8xbf16>, vector<8x32xbf16>, vector<8x32xf32> -> vector<8x32xf32>
    %cst_75 = arith.constant dense<0.000000e+00> : vector<8x32xf32>
    %86 = tpu.matmul %14, %84, %cst_75 {dimension_numbers = #tpu.dot_dimension_numbers<[1], [0], [0], [1], [0, 0, 1, 1], [], []>} : vector<8x8xbf16>, vector<8x32xbf16>, vector<8x32xf32> -> vector<8x32xf32>
    %87 = arith.addf %85, %86 : vector<8x32xf32>
    %cst_76 = arith.constant dense<0.000000e+00> : vector<8x32xf32>
    %88 = tpu.matmul %16, %83, %cst_76 {dimension_numbers = #tpu.dot_dimension_numbers<[1], [0], [0], [1], [0, 0, 1, 1], [], []>} : vector<8x8xbf16>, vector<8x32xbf16>, vector<8x32xf32> -> vector<8x32xf32>
    %cst_77 = arith.constant dense<0.000000e+00> : vector<8x32xf32>
    %89 = tpu.matmul %18, %84, %cst_77 {dimension_numbers = #tpu.dot_dimension_numbers<[1], [0], [0], [1], [0, 0, 1, 1], [], []>} : vector<8x8xbf16>, vector<8x32xbf16>, vector<8x32xf32> -> vector<8x32xf32>
    %90 = arith.addf %88, %89 : vector<8x32xf32>
    %91 = vector.broadcast %24 : vector<8x1xf32> to vector<8x32xf32>
    %92 = vector.broadcast %30 : vector<1x32xf32> to vector<8x32xf32>
    %93 = arith.mulf %91, %92 : vector<8x32xf32>
    %94 = arith.truncf %87 : vector<8x32xf32> to vector<8x32xbf16>
    %cst_78 = arith.constant dense<0.000000e+00> : vector<8x32xf32>
    %95 = tpu.matmul %94, %31, %cst_78 {dimension_numbers = #tpu.dot_dimension_numbers<[1], [0], [0], [1], [0, 0, 1, 1], [], []>} : vector<8x32xbf16>, vector<32x32xbf16>, vector<8x32xf32> -> vector<8x32xf32>
    %96 = arith.addf %93, %95 : vector<8x32xf32>
    %97 = vector.broadcast %32 : vector<1x32xf32> to vector<8x32xf32>
    %98 = arith.addf %96, %97 : vector<8x32xf32>
    %99 = math.tanh %98 : vector<8x32xf32>
    %100 = vector.broadcast %26 : vector<8x1xf32> to vector<8x32xf32>
    %101 = vector.broadcast %30 : vector<1x32xf32> to vector<8x32xf32>
    %102 = arith.mulf %100, %101 : vector<8x32xf32>
    %103 = arith.truncf %90 : vector<8x32xf32> to vector<8x32xbf16>
    %cst_79 = arith.constant dense<0.000000e+00> : vector<8x32xf32>
    %104 = tpu.matmul %103, %31, %cst_79 {dimension_numbers = #tpu.dot_dimension_numbers<[1], [0], [0], [1], [0, 0, 1, 1], [], []>} : vector<8x32xbf16>, vector<32x32xbf16>, vector<8x32xf32> -> vector<8x32xf32>
    %105 = arith.addf %102, %104 : vector<8x32xf32>
    %106 = vector.broadcast %32 : vector<1x32xf32> to vector<8x32xf32>
    %107 = arith.addf %105, %106 : vector<8x32xf32>
    %108 = math.tanh %107 : vector<8x32xf32>
    %109 = vector.extract_strided_slice %74 {offsets = [0, 0], sizes = [8, 32], strides = [1, 1]} : vector<8x64xf32> to vector<8x32xf32>
    %110 = vector.extract_strided_slice %74 {offsets = [0, 32], sizes = [8, 32], strides = [1, 1]} : vector<8x64xf32> to vector<8x32xf32>
    %111 = arith.mulf %109, %34 : vector<8x32xf32>
    %cst_80 = arith.constant 1.000000e+00 : f32
    %112 = vector.broadcast %cst_80 : f32 to vector<8x32xf32>
    %113 = arith.subf %112, %109 : vector<8x32xf32>
    %114 = arith.mulf %113, %99 : vector<8x32xf32>
    %115 = arith.addf %111, %114 : vector<8x32xf32>
    %c0_81 = arith.constant 0 : index
    %c0_82 = arith.constant 0 : index
    %c0_83 = arith.constant 0 : index
    %116 = vector.load %arg11[%c0_81, %c0_82, %c0_83] : memref<1x8x32xf32, #tpu.memory_space<vmem>>, vector<1x8x32xf32>
    %117 = vector.shape_cast %116 : vector<1x8x32xf32> to vector<8x32xf32>
    %118 = vector.shape_cast %115 : vector<8x32xf32> to vector<1x8x32xf32>
    tpu.vector_store %arg11[%c0_81, %c0_82, %c0_83], %118 {strides = array<i32>} : memref<1x8x32xf32, #tpu.memory_space<vmem>>, vector<1x8x32xf32>,
    %119 = arith.mulf %110, %36 : vector<8x32xf32>
    %cst_84 = arith.constant 1.000000e+00 : f32
    %120 = vector.broadcast %cst_84 : f32 to vector<8x32xf32>
    %121 = arith.subf %120, %110 : vector<8x32xf32>
    %122 = arith.mulf %121, %108 : vector<8x32xf32>
    %123 = arith.addf %119, %122 : vector<8x32xf32>
    %c0_85 = arith.constant 0 : index
    %c0_86 = arith.constant 0 : index
    %c0_87 = arith.constant 0 : index
    %124 = vector.load %arg12[%c0_85, %c0_86, %c0_87] : memref<1x8x32xf32, #tpu.memory_space<vmem>>, vector<1x8x32xf32>
    %125 = vector.shape_cast %124 : vector<1x8x32xf32> to vector<8x32xf32>
    %126 = vector.shape_cast %123 : vector<8x32xf32> to vector<1x8x32xf32>
    tpu.vector_store %arg12[%c0_85, %c0_86, %c0_87], %126 {strides = array<i32>} : memref<1x8x32xf32, #tpu.memory_space<vmem>>, vector<1x8x32xf32>,
    return
  }
  func.func @transform_0(%arg0: i32, %arg1: i32) -> (i32, i32, i32, i32, i32) {
    %c0_i32 = arith.constant 0 : i32
    %c0_i32_0 = arith.constant 0 : i32
    %c0_i32_1 = arith.constant 0 : i32
    %c0_i32_2 = arith.constant 0 : i32
    return %arg0, %arg1, %c0_i32, %c0_i32_0, %c0_i32_1 : i32, i32, i32, i32, i32
  }
  func.func @transform_1(%arg0: i32, %arg1: i32) -> (i32, i32, i32, i32, i32) {
    %c0_i32 = arith.constant 0 : i32
    %c0_i32_0 = arith.constant 0 : i32
    %c0_i32_1 = arith.constant 0 : i32
    %c0_i32_2 = arith.constant 0 : i32
    return %arg0, %arg1, %c0_i32, %c0_i32_0, %c0_i32_1 : i32, i32, i32, i32, i32
  }
  func.func @transform_2(%arg0: i32, %arg1: i32) -> (i32, i32, i32) {
    %c0_i32 = arith.constant 0 : i32
    %c0_i32_0 = arith.constant 0 : i32
    %c0_i32_1 = arith.constant 0 : i32
    %c0_i32_2 = arith.constant 0 : i32
    return %c0_i32, %c0_i32_0, %c0_i32_1 : i32, i32, i32
  }
  func.func @transform_3(%arg0: i32, %arg1: i32) -> (i32, i32) {
    %c0_i32 = arith.constant 0 : i32
    %c0_i32_0 = arith.constant 0 : i32
    %c0_i32_1 = arith.constant 0 : i32
    return %c0_i32, %c0_i32_0 : i32, i32
  }
  func.func @transform_4(%arg0: i32, %arg1: i32) -> (i32, i32) {
    %c0_i32 = arith.constant 0 : i32
    %c0_i32_0 = arith.constant 0 : i32
    %c0_i32_1 = arith.constant 0 : i32
    return %c0_i32, %c0_i32_0 : i32, i32
  }
  func.func @transform_5(%arg0: i32, %arg1: i32) -> (i32, i32) {
    %c0_i32 = arith.constant 0 : i32
    %c0_i32_0 = arith.constant 0 : i32
    %c0_i32_1 = arith.constant 0 : i32
    return %c0_i32, %c0_i32_0 : i32, i32
  }
  func.func @transform_6(%arg0: i32, %arg1: i32) -> (i32, i32) {
    %c0_i32 = arith.constant 0 : i32
    %c0_i32_0 = arith.constant 0 : i32
    %c0_i32_1 = arith.constant 0 : i32
    return %c0_i32, %c0_i32_0 : i32, i32
  }
  func.func @transform_7(%arg0: i32, %arg1: i32) -> (i32, i32) {
    %c0_i32 = arith.constant 0 : i32
    %c0_i32_0 = arith.constant 0 : i32
    %c0_i32_1 = arith.constant 0 : i32
    return %c0_i32, %c0_i32_0 : i32, i32
  }
  func.func @transform_8(%arg0: i32, %arg1: i32) -> (i32, i32) {
    %c0_i32 = arith.constant 0 : i32
    %c0_i32_0 = arith.constant 0 : i32
    %c0_i32_1 = arith.constant 0 : i32
    return %c0_i32, %c0_i32_0 : i32, i32
  }
  func.func @transform_9(%arg0: i32, %arg1: i32) -> (i32, i32, i32) {
    %c0_i32 = arith.constant 0 : i32
    %c0_i32_0 = arith.constant 0 : i32
    %c0_i32_1 = arith.constant 0 : i32
    return %arg0, %c0_i32, %c0_i32_0 : i32, i32, i32
  }
  func.func @transform_10(%arg0: i32, %arg1: i32) -> (i32, i32, i32) {
    %c0_i32 = arith.constant 0 : i32
    %c0_i32_0 = arith.constant 0 : i32
    %c0_i32_1 = arith.constant 0 : i32
    return %arg0, %c0_i32, %c0_i32_0 : i32, i32, i32
  }
}

</mosaic_0001>

<llo_original>
// kernel: tgcn_forward.1
$region0: #{tgcn_forward.1}
  #allocation0 [shape = 'u32[]', space=smem, size = 0x4, offset = 0x4, fixed_abs, tag = 'smem constant byte address 0x4 - core index']
  #allocation1 [shape = 'u32[144,128]{1,0:T(1,128)}', space=vmem, size = 0x12000, scoped, tag = 'internal scratch']
  #allocation2 [shape = 'bf16[8,32]{1,0:T(8,128)(2,1)}', space=vmem, size = 0x800, scoped, tag = 'scratch operand']
  #allocation3 [shape = 'bf16[8,32]{1,0:T(8,128)(2,1)}', space=vmem, size = 0x800, scoped, tag = 'scratch operand']
  %s0 = inlined_call_operand.vmem [shape: f32[2,8,2,8,1], index: 0, kind: input, shape index: {}]
  %s1 = inlined_call_operand.vmem [shape: f32[2,8,2,8,1], index: 1, kind: input, shape index: {}]
  %s2 = inlined_call_operand.vmem [shape: bf16[8,8,8], index: 2, kind: input, shape index: {}]
  %s3 = inlined_call_operand.vmem [shape: f32[1,64], index: 3, kind: input, shape index: {}]
  %s4 = inlined_call_operand.vmem [shape: bf16[32,64], index: 4, kind: input, shape index: {}]
  %s5 = inlined_call_operand.vmem [shape: f32[1,64], index: 5, kind: input, shape index: {}]
  %s6 = inlined_call_operand.vmem [shape: f32[1,32], index: 6, kind: input, shape index: {}]
  %s7 = inlined_call_operand.vmem [shape: bf16[32,32], index: 7, kind: input, shape index: {}]
  %s8 = inlined_call_operand.vmem [shape: f32[1,32], index: 8, kind: input, shape index: {}]
  %s9 = inlined_call_operand.vmem [shape: f32[2,8,32], index: 9, kind: output, shape index: {0}]
  %s10 = inlined_call_operand.vmem [shape: f32[2,8,32], index: 10, kind: output, shape index: {1}]
  %11 = xla_tuple %s9, %s10
  %s12 = sld [smem:[#allocation0]]
  $region81: #{tgcn_forward.1} parent=0
    _
  %s14 = ssub.s32 1, %s12
  %s15 = scalar_select 0, %s14, %s12
  loop: start=0, step=1, limit=18
  $region2: #{tgcn_forward.1} parent=0 // loop_pre_header
    _
  $region3: #{tgcn_forward.1} parent=0 // loop_header
    %s17 = sphi 0, %s21
    %p18 = scmp.ge.s32.totalorder %s17, 18
    %s24 = sphi 0, %s36
    %s25 = sphi 0, %s32
    %s26 = sphi 0, %s24
    %s27 = sphi 0, %s25
    %s28 = sphi 0, %s26
    %s29 = sphi 0, %s27
    %s41 = sphi 0, %s43
    %s44 = sphi 0, %s41
    %s45 = sphi 0, %s44
    %s61 = sphi 0, %s45
    %s69 = sphi 0, %s71
    %s72 = sphi 0, %s69
    %s73 = sphi 0, %s72
    %s89 = sphi 0, %s73
    %s93 = sphi 0, %s93
    %s95 = sphi 0, %s93
    %s96 = sphi 0, %s95
    %s110 = sphi 0, %s96
    %s114 = sphi 0, %s114
    %s116 = sphi 0, %s114
    %s117 = sphi 0, %s116
    %s131 = sphi 0, %s117
    %s135 = sphi 0, %s135
    %s137 = sphi 0, %s135
    %s138 = sphi 0, %s137
    %s152 = sphi 0, %s138
    %s156 = sphi 0, %s156
    %s158 = sphi 0, %s156
    %s159 = sphi 0, %s158
    %s173 = sphi 0, %s159
    %s177 = sphi 0, %s177
    %s179 = sphi 0, %s177
    %s180 = sphi 0, %s179
    %s194 = sphi 0, %s180
    %s198 = sphi 0, %s198
    %s200 = sphi 0, %s198
    %s201 = sphi 0, %s200
    %s215 = sphi 0, %s201
    %s219 = sphi 0, %s219
    %s221 = sphi 0, %s219
    %s222 = sphi 0, %s221
    %s236 = sphi 0, %s222
    %s242 = sphi 0, %s244
    %s245 = sphi 0, %s242
    %s246 = sphi 0, %s245
    %s262 = sphi 0, %s246
    %s268 = sphi 0, %s270
    %s271 = sphi 0, %s268
    %s272 = sphi 0, %s271
    %s288 = sphi 0, %s272
  $region4: #{tgcn_forward.1} parent=0 // loop_header_branch
    %20 = sbr.rel (%p18) target = $region8
  $region5: #{tgcn_forward.1} parent=0 // loop_body
    %s22 = ssub.s32 %s17, 1
    %s23 = ssub.s32 %s17, 2
    %s30 = sadd.s32 1, %s25
    %p31 = scmp.ge.s32.totalorder %s30, 8
    %s32 = scalar_select %p31, 0, %s30
    %s33 = sadd.s32 1, %s24
    %s34 = scalar_select %p31, %s33, %s24
    %p35 = scmp.ge.s32.totalorder %s34, 2
    %s36 = scalar_select %p35, 0, %s34
    %s37 = ssub.s32 %s24, %s36
    %s38 = ssub.s32 %s25, %s32
    %s39 = sor.u32 %s37, %s38
    %p40 = scmp.eq.s32.totalorder %s39, 0
    %s42 = sadd.s32 %s41, 1
    %s43 = scalar_select %p40, %s41, %s42
    %p46 = pneg %p40
    %p47 = scmp.eq.s32.totalorder %s17, 15
    %p48 = por %p46, %p47
    %p49 = scmp.ne.s32.totalorder %s41, %s44
    %p50 = scmp.eq.s32.totalorder %s17, 0
    %p51 = por %p49, %p50
    %p52 = scmp.ne.s32.totalorder %s41, %s44
    %p53 = scmp.eq.s32.totalorder %s22, 15
    %p54 = por %p52, %p53
    %p55 = scmp.ne.s32.totalorder %s44, %s45
    %p56 = scmp.eq.s32.totalorder %s22, 0
    %p57 = por %p55, %p56
    %p58 = scmp.ne.s32.totalorder %s44, %s45
    %p59 = scmp.eq.s32.totalorder %s23, 15
    %p60 = por %p58, %p59
    %p62 = scmp.ne.s32.totalorder %s45, %s61
    %p63 = scmp.eq.s32.totalorder %s23, 0
    %p64 = por %p62, %p63
    %s65 = ssub.s32 %s24, %s36
    %s66 = ssub.s32 %s25, %s32
    %s67 = sor.u32 %s65, %s66
    %p68 = scmp.eq.s32.totalorder %s67, 0
    %s70 = sadd.s32 %s69, 1
    %s71 = scalar_select %p68, %s69, %s70
    %p74 = pneg %p68
    %p75 = scmp.eq.s32.totalorder %s17, 15
    %p76 = por %p74, %p75
    %p77 = scmp.ne.s32.totalorder %s69, %s72
    %p78 = scmp.eq.s32.totalorder %s17, 0
    %p79 = por %p77, %p78
    %p80 = scmp.ne.s32.totalorder %s69, %s72
    %p81 = scmp.eq.s32.totalorder %s22, 15
    %p82 = por %p80, %p81
    %p83 = scmp.ne.s32.totalorder %s72, %s73
    %p84 = scmp.eq.s32.totalorder %s22, 0
    %p85 = por %p83, %p84
    %p86 = scmp.ne.s32.totalorder %s72, %s73
    %p87 = scmp.eq.s32.totalorder %s23, 15
    %p88 = por %p86, %p87
    %p90 = scmp.ne.s32.totalorder %s73, %s89
    %p91 = scmp.eq.s32.totalorder %s23, 0
    %p92 = por %p90, %p91
    %s94 = sadd.s32 %s93, 1
    %p97 = scmp.eq.s32.totalorder %s17, 15
    %p98 = scmp.ne.s32.totalorder %s93, %s95
    %p99 = scmp.eq.s32.totalorder %s17, 0
    %p100 = por %p98, %p99
    %p101 = scmp.ne.s32.totalorder %s93, %s95
    %p102 = scmp.eq.s32.totalorder %s22, 15
    %p103 = por %p101, %p102
    %p104 = scmp.ne.s32.totalorder %s95, %s96
    %p105 = scmp.eq.s32.totalorder %s22, 0
    %p106 = por %p104, %p105
    %p107 = scmp.ne.s32.totalorder %s95, %s96
    %p108 = scmp.eq.s32.totalorder %s23, 15
    %p109 = por %p107, %p108
    %p111 = scmp.ne.s32.totalorder %s96, %s110
    %p112 = scmp.eq.s32.totalorder %s23, 0
    %p113 = por %p111, %p112
    %s115 = sadd.s32 %s114, 1
    %p118 = scmp.eq.s32.totalorder %s17, 15
    %p119 = scmp.ne.s32.totalorder %s114, %s116
    %p120 = scmp.eq.s32.totalorder %s17, 0
    %p121 = por %p119, %p120
    %p122 = scmp.ne.s32.totalorder %s114, %s116
    %p123 = scmp.eq.s32.totalorder %s22, 15
    %p124 = por %p122, %p123
    %p125 = scmp.ne.s32.totalorder %s116, %s117
    %p126 = scmp.eq.s32.totalorder %s22, 0
    %p127 = por %p125, %p126
    %p128 = scmp.ne.s32.totalorder %s116, %s117
    %p129 = scmp.eq.s32.totalorder %s23, 15
    %p130 = por %p128, %p129
    %p132 = scmp.ne.s32.totalorder %s117, %s131
    %p133 = scmp.eq.s32.totalorder %s23, 0
    %p134 = por %p132, %p133
    %s136 = sadd.s32 %s135, 1
    %p139 = scmp.eq.s32.totalorder %s17, 15
    %p140 = scmp.ne.s32.totalorder %s135, %s137
    %p141 = scmp.eq.s32.totalorder %s17, 0
    %p142 = por %p140, %p141
    %p143 = scmp.ne.s32.totalorder %s135, %s137
    %p144 = scmp.eq.s32.totalorder %s22, 15
    %p145 = por %p143, %p144
    %p146 = scmp.ne.s32.totalorder %s137, %s138
    %p147 = scmp.eq.s32.totalorder %s22, 0
    %p148 = por %p146, %p147
    %p149 = scmp.ne.s32.totalorder %s137, %s138
    %p150 = scmp.eq.s32.totalorder %s23, 15
    %p151 = por %p149, %p150
    %p153 = scmp.ne.s32.totalorder %s138, %s152
    %p154 = scmp.eq.s32.totalorder %s23, 0
    %p155 = por %p153, %p154
    %s157 = sadd.s32 %s156, 1
    %p160 = scmp.eq.s32.totalorder %s17, 15
    %p161 = scmp.ne.s32.totalorder %s156, %s158
    %p162 = scmp.eq.s32.totalorder %s17, 0
    %p163 = por %p161, %p162
    %p164 = scmp.ne.s32.totalorder %s156, %s158
    %p165 = scmp.eq.s32.totalorder %s22, 15
    %p166 = por %p164, %p165
    %p167 = scmp.ne.s32.totalorder %s158, %s159
    %p168 = scmp.eq.s32.totalorder %s22, 0
    %p169 = por %p167, %p168
    %p170 = scmp.ne.s32.totalorder %s158, %s159
    %p171 = scmp.eq.s32.totalorder %s23, 15
    %p172 = por %p170, %p171
    %p174 = scmp.ne.s32.totalorder %s159, %s173
    %p175 = scmp.eq.s32.totalorder %s23, 0
    %p176 = por %p174, %p175
    %s178 = sadd.s32 %s177, 1
    %p181 = scmp.eq.s32.totalorder %s17, 15
    %p182 = scmp.ne.s32.totalorder %s177, %s179
    %p183 = scmp.eq.s32.totalorder %s17, 0
    %p184 = por %p182, %p183
    %p185 = scmp.ne.s32.totalorder %s177, %s179
    %p186 = scmp.eq.s32.totalorder %s22, 15
    %p187 = por %p185, %p186
    %p188 = scmp.ne.s32.totalorder %s179, %s180
    %p189 = scmp.eq.s32.totalorder %s22, 0
    %p190 = por %p188, %p189
    %p191 = scmp.ne.s32.totalorder %s179, %s180
    %p192 = scmp.eq.s32.totalorder %s23, 15
    %p193 = por %p191, %p192
    %p195 = scmp.ne.s32.totalorder %s180, %s194
    %p196 = scmp.eq.s32.totalorder %s23, 0
    %p197 = por %p195, %p196
    %s199 = sadd.s32 %s198, 1
    %p202 = scmp.eq.s32.totalorder %s17, 15
    %p203 = scmp.ne.s32.totalorder %s198, %s200
    %p204 = scmp.eq.s32.totalorder %s17, 0
    %p205 = por %p203, %p204
    %p206 = scmp.ne.s32.totalorder %s198, %s200
    %p207 = scmp.eq.s32.totalorder %s22, 15
    %p208 = por %p206, %p207
    %p209 = scmp.ne.s32.totalorder %s200, %s201
    %p210 = scmp.eq.s32.totalorder %s22, 0
    %p211 = por %p209, %p210
    %p212 = scmp.ne.s32.totalorder %s200, %s201
    %p213 = scmp.eq.s32.totalorder %s23, 15
    %p214 = por %p212, %p213
    %p216 = scmp.ne.s32.totalorder %s201, %s215
    %p217 = scmp.eq.s32.totalorder %s23, 0
    %p218 = por %p216, %p217
    %s220 = sadd.s32 %s219, 1
    %p223 = scmp.eq.s32.totalorder %s17, 15
    %p224 = scmp.ne.s32.totalorder %s219, %s221
    %p225 = scmp.eq.s32.totalorder %s17, 0
    %p226 = por %p224, %p225
    %p227 = scmp.ne.s32.totalorder %s219, %s221
    %p228 = scmp.eq.s32.totalorder %s22, 15
    %p229 = por %p227, %p228
    %p230 = scmp.ne.s32.totalorder %s221, %s222
    %p231 = scmp.eq.s32.totalorder %s22, 0
    %p232 = por %p230, %p231
    %p233 = scmp.ne.s32.totalorder %s221, %s222
    %p234 = scmp.eq.s32.totalorder %s23, 15
    %p235 = por %p233, %p234
    %p237 = scmp.ne.s32.totalorder %s222, %s236
    %p238 = scmp.eq.s32.totalorder %s23, 0
    %p239 = por %p237, %p238
    %s240 = ssub.s32 %s24, %s36
    %p241 = scmp.eq.s32.totalorder %s240, 0
    %s243 = sadd.s32 %s242, 1
    %s244 = scalar_select %p241, %s242, %s243
    %p247 = pneg %p241
    %p248 = scmp.eq.s32.totalorder %s17, 15
    %p249 = por %p247, %p248
    %p250 = scmp.ne.s32.totalorder %s242, %s245
    %p251 = scmp.eq.s32.totalorder %s17, 0
    %p252 = por %p250, %p251
    %p253 = scmp.ne.s32.totalorder %s242, %s245
    %p254 = scmp.eq.s32.totalorder %s22, 15
    %p255 = por %p253, %p254
    %p256 = scmp.ne.s32.totalorder %s245, %s246
    %p257 = scmp.eq.s32.totalorder %s22, 0
    %p258 = por %p256, %p257
    %p259 = scmp.ne.s32.totalorder %s245, %s246
    %p260 = scmp.eq.s32.totalorder %s23, 15
    %p261 = por %p259, %p260
    %p263 = scmp.ne.s32.totalorder %s246, %s262
    %p264 = scmp.eq.s32.totalorder %s23, 0
    %p265 = por %p263, %p264
    %s266 = ssub.s32 %s24, %s36
    %p267 = scmp.eq.s32.totalorder %s266, 0
    %s269 = sadd.s32 %s268, 1
    %s270 = scalar_select %p267, %s268, %s269
    %p273 = pneg %p267
    %p274 = scmp.eq.s32.totalorder %s17, 15
    %p275 = por %p273, %p274
    %p276 = scmp.ne.s32.totalorder %s268, %s271
    %p277 = scmp.eq.s32.totalorder %s17, 0
    %p278 = por %p276, %p277
    %p279 = scmp.ne.s32.totalorder %s268, %s271
    %p280 = scmp.eq.s32.totalorder %s22, 15
    %p281 = por %p279, %p280
    %p282 = scmp.ne.s32.totalorder %s271, %s272
    %p283 = scmp.eq.s32.totalorder %s22, 0
    %p284 = por %p282, %p283
    %p285 = scmp.ne.s32.totalorder %s271, %s272
    %p286 = scmp.eq.s32.totalorder %s23, 15
    %p287 = por %p285, %p286
    %p289 = scmp.ne.s32.totalorder %s272, %s288
    %p290 = scmp.eq.s32.totalorder %s23, 0
    %p291 = por %p289, %p290
    %p292 = scmp.le.s32.totalorder 1, %s17
    %p293 = scmp.lt.s32.totalorder %s17, 17
    %p294 = pnand %p292, %p293
    %p295 = pneg %p294
    // Predicated region
    $region9: #{tgcn_forward.1} parent=5 // pred_check
      _
    $region10: #{tgcn_forward.1} parent=5 // pred_check_branch
      %297 = sbr.rel (%p294) target = $region12
    $region11: #{tgcn_forward.1} parent=5 // pred_region
      %s298 = ssub.s32 %s17, 1
      // Predicated region
      $region13: #{tgcn_forward.1} parent=11 // pred_check
        %p299 = pneg %p106
      $region14: #{tgcn_forward.1} parent=11 // pred_check_branch
        %301 = sbr.rel (%p299) target = $region16
      $region15: #{tgcn_forward.1} parent=11 // pred_region
        _
      $region16: #{tgcn_forward.1} parent=11 // pred_fallthru
        _
      // Predicated region
      $region17: #{tgcn_forward.1} parent=11 // pred_check
        %p302 = pneg %p127
      $region18: #{tgcn_forward.1} parent=11 // pred_check_branch
        %304 = sbr.rel (%p302) target = $region20
      $region19: #{tgcn_forward.1} parent=11 // pred_region
        _
      $region20: #{tgcn_forward.1} parent=11 // pred_fallthru
        _
      // Predicated region
      $region21: #{tgcn_forward.1} parent=11 // pred_check
        %p305 = pneg %p148
      $region22: #{tgcn_forward.1} parent=11 // pred_check_branch
        %307 = sbr.rel (%p305) target = $region24
      $region23: #{tgcn_forward.1} parent=11 // pred_region
        _
      $region24: #{tgcn_forward.1} parent=11 // pred_fallthru
        _
      // Predicated region
      $region25: #{tgcn_forward.1} parent=11 // pred_check
        %p308 = pneg %p169
      $region26: #{tgcn_forward.1} parent=11 // pred_check_branch
        %310 = sbr.rel (%p308) target = $region28
      $region27: #{tgcn_forward.1} parent=11 // pred_region
        _
      $region28: #{tgcn_forward.1} parent=11 // pred_fallthru
        _
      // Predicated region
      $region29: #{tgcn_forward.1} parent=11 // pred_check
        %p311 = pneg %p190
      $region30: #{tgcn_forward.1} parent=11 // pred_check_branch
        %313 = sbr.rel (%p311) target = $region32
      $region31: #{tgcn_forward.1} parent=11 // pred_region
        _
      $region32: #{tgcn_forward.1} parent=11 // pred_fallthru
        _
      // Predicated region
      $region33: #{tgcn_forward.1} parent=11 // pred_check
        %p314 = pneg %p211
      $region34: #{tgcn_forward.1} parent=11 // pred_check_branch
        %316 = sbr.rel (%p314) target = $region36
      $region35: #{tgcn_forward.1} parent=11 // pred_region
        _
      $region36: #{tgcn_forward.1} parent=11 // pred_fallthru
        _
      // Predicated region
      $region37: #{tgcn_forward.1} parent=11 // pred_check
        %p317 = pneg %p232
      $region38: #{tgcn_forward.1} parent=11 // pred_check_branch
        %319 = sbr.rel (%p317) target = $region40
      $region39: #{tgcn_forward.1} parent=11 // pred_region
        _
      $region40: #{tgcn_forward.1} parent=11 // pred_fallthru
        _
    $region12: #{tgcn_forward.1} parent=5 // pred_fallthru
      _
    %p320 = scmp.lt.s32.totalorder %s17, 16
    // Predicated region
    $region41: #{tgcn_forward.1} parent=5 // pred_check
      %p321 = pneg %p320
    $region42: #{tgcn_forward.1} parent=5 // pred_check_branch
      %323 = sbr.rel (%p321) target = $region44
    $region43: #{tgcn_forward.1} parent=5 // pred_region
      // Predicated region
      $region45: #{tgcn_forward.1} parent=43 // pred_check
        %p324 = pneg %p51
      $region46: #{tgcn_forward.1} parent=43 // pred_check_branch
        %326 = sbr.rel (%p324) target = $region48
      $region47: #{tgcn_forward.1} parent=43 // pred_region
        %p327 = scmp.lt.s32.totalorder %s24, 1
        %s328 = scalar_select %p327, %s24, 1
        %p329 = scmp.lt.s32.totalorder %s25, 7
        %s330 = scalar_select %p329, %s25, 7
        %s331 = smul.addr %s330, 2
        %s332 = smul.addr %s328, 16
        %s333 = sadd.s32 %s331, %s332
        %s334 = smul.addr %s333, 8
        %s335 = scalar_lea.vmem %s0, %s334
      $region48: #{tgcn_forward.1} parent=43 // pred_fallthru
        _
      // Predicated region
      $region49: #{tgcn_forward.1} parent=43 // pred_check
        %p336 = pneg %p79
      $region50: #{tgcn_forward.1} parent=43 // pred_check_branch
        %338 = sbr.rel (%p336) target = $region52
      $region51: #{tgcn_forward.1} parent=43 // pred_region
        %p339 = scmp.lt.s32.totalorder %s24, 1
        %s340 = scalar_select %p339, %s24, 1
        %p341 = scmp.lt.s32.totalorder %s25, 7
        %s342 = scalar_select %p341, %s25, 7
        %s343 = smul.addr %s342, 2
        %s344 = smul.addr %s340, 16
        %s345 = sadd.s32 %s343, %s344
        %s346 = smul.addr %s345, 8
        %s347 = scalar_lea.vmem %s1, %s346
      $region52: #{tgcn_forward.1} parent=43 // pred_fallthru
        _
    $region44: #{tgcn_forward.1} parent=5 // pred_fallthru
      _
    %p348 = scmp.le.s32.totalorder 1, %s17
    %p349 = scmp.lt.s32.totalorder %s17, 17
    %p350 = pnand %p348, %p349
    %p351 = pneg %p350
    // Predicated region
    $region53: #{tgcn_forward.1} parent=5 // pred_check
      _
    $region54: #{tgcn_forward.1} parent=5 // pred_check_branch
      %353 = sbr.rel (%p350) target = $region56
    $region55: #{tgcn_forward.1} parent=5 // pred_region
      %s354 = ssub.s32 %s17, 1
      %p355 = scmp.lt.s32.totalorder %s26, 1
      %s356 = scalar_select %p355, %s26, 1
      %p357 = scmp.lt.s32.totalorder %s27, 7
      %s358 = scalar_select %p357, %s27, 7
      %s359 = smul.addr %s358, 2
      %s360 = smul.addr %s356, 16
      %s361 = sadd.s32 %s359, %s360
      %s362 = smul.addr %s361, 8
      %s363 = scalar_lea.vmem %s0, %s362
      %p364 = pneg %p57
      %p365 = pneg %p54
      %p366 = scmp.lt.s32.totalorder %s26, 1
      %s367 = scalar_select %p366, %s26, 1
      %p368 = scmp.lt.s32.totalorder %s27, 7
      %s369 = scalar_select %p368, %s27, 7
      %s370 = smul.addr %s369, 2
      %s371 = smul.addr %s367, 16
      %s372 = sadd.s32 %s370, %s371
      %s373 = smul.addr %s372, 8
      %s374 = scalar_lea.vmem %s1, %s373
      %p375 = pneg %p85
      %p376 = pneg %p82
      %p377 = pneg %p106
      %p378 = pneg %p103
      %p379 = pneg %p127
      %p380 = pneg %p124
      %p381 = pneg %p148
      %p382 = pneg %p145
      %p383 = pneg %p169
      %p384 = pneg %p166
      %p385 = pneg %p190
      %p386 = pneg %p187
      %p387 = pneg %p211
      %p388 = pneg %p208
      %p389 = pneg %p232
      %p390 = pneg %p229
      %p391 = pneg %p258
      %p392 = pneg %p255
      %p393 = scmp.lt.s32.totalorder %s26, 1
      %s394 = scalar_select %p393, %s26, 1
      %s395 = smul.addr %s394, 8
      %s396 = scalar_lea.vmem %s9, %s395
      %p397 = pneg %p284
      %p398 = pneg %p281
      %p399 = scmp.lt.s32.totalorder %s26, 1
      %s400 = scalar_select %p399, %s26, 1
      %s401 = smul.addr %s400, 8
      %s402 = scalar_lea.vmem %s10, %s401
      %p403 = scmp.lt.s32.totalorder %s26, 1
      %s404 = scalar_select %p403, %s26, 1
      %p405 = scmp.lt.s32.totalorder %s27, 7
      %s406 = scalar_select %p405, %s27, 7
      %s407 = smul.addr %s406, 2
      %s408 = smul.addr %s404, 16
      %s409 = sadd.s32 %s407, %s408
      %s410 = smul.addr %s409, 8
      %s411 = scalar_lea.vmem %s0, %s410
      %p412 = scmp.lt.s32.totalorder %s26, 1
      %s413 = scalar_select %p412, %s26, 1
      %p414 = scmp.lt.s32.totalorder %s27, 7
      %s415 = scalar_select %p414, %s27, 7
      %s416 = smul.addr %s415, 2
      %s417 = smul.addr %s413, 16
      %s418 = sadd.s32 %s416, %s417
      %s419 = smul.addr %s418, 8
      %s420 = scalar_lea.vmem %s1, %s419
      %p421 = scmp.lt.s32.totalorder %s26, 1
      %s422 = scalar_select %p421, %s26, 1
      %s423 = smul.addr %s422, 8
      %s424 = scalar_lea.vmem %s9, %s423
      %p425 = scmp.lt.s32.totalorder %s26, 1
      %s426 = scalar_select %p425, %s26, 1
      %s427 = smul.addr %s426, 8
      %s428 = scalar_lea.vmem %s10, %s427
      %p430 = scmp.eq.s32.totalorder %s27, 0
      // Predicated region
      $region57: #{tgcn_forward.1} parent=55 // pred_check
        %p431 = pneg %p430
      $region58: #{tgcn_forward.1} parent=55 // pred_check_branch
        %433 = sbr.rel (%p431) target = $region60
      $region59: #{tgcn_forward.1} parent=55 // pred_region
        %vm434 = vcmask 261120
        %435 = vst.msk [vmem:[%s424] sm:$0xff] %vm434, 0.0
        %436 = vst.msk [vmem:[%s428] sm:$0xff] %vm434, 0.0
      $region60: #{tgcn_forward.1} parent=55 // pred_fallthru
        _
      %v437 = vld [vmem:[%s2] sm:$0xf]
      %s438 = scalar_lea.vmem %s2, 4
      %v439 = vld [vmem:[%s438] sm:$0xf]
      %s440 = scalar_lea.vmem %s2, 8
      %v441 = vld [vmem:[%s440] sm:$0xf]
      %s442 = scalar_lea.vmem %s2, 12
      %v443 = vld [vmem:[%s442] sm:$0xf]
      %s444 = scalar_lea.vmem %s2, 16
      %v445 = vld [vmem:[%s444] sm:$0xf]
      %s446 = scalar_lea.vmem %s2, 20
      %v447 = vld [vmem:[%s446] sm:$0xf]
      %s448 = scalar_lea.vmem %s2, 24
      %v449 = vld [vmem:[%s448] sm:$0xf]
      %s450 = scalar_lea.vmem %s2, 28
      %v451 = vld [vmem:[%s450] sm:$0xf]
      %v452 = vld [vmem:[%s411] sm:$0xff]
      %s453 = scalar_lea.vmem %s411, 8
      %v454 = vld [vmem:[%s453] sm:$0xff]
      %v455 = vld [vmem:[%s420] sm:$0xff]
      %s456 = scalar_lea.vmem %s420, 8
      %v457 = vld [vmem:[%s456] sm:$0xff]
      %v458 = vld [vmem:[%s3] sm:$0x1]
      %v459 = vld [vmem:[%s4] sm:$0xf]
      %v460 = vld [vmem:[%s4 + $0x4] sm:$0xf]
      %v461 = vld [vmem:[%s4 + $0x8] sm:$0xf]
      %v462 = vld [vmem:[%s4 + $0xc] sm:$0xf]
      %v463 = vld [vmem:[%s5] sm:$0x1]
      %v464 = vld [vmem:[%s6] sm:$0x1]
      %v465 = vld [vmem:[%s7] sm:$0xf]
      %v466 = vld [vmem:[%s7 + $0x4] sm:$0xf]
      %v467 = vld [vmem:[%s7 + $0x8] sm:$0xf]
      %v468 = vld [vmem:[%s7 + $0xc] sm:$0xf]
      %v469 = vld [vmem:[%s8] sm:$0x1]
      %v470 = vld [vmem:[%s424] sm:$0xff]
      %v471 = vld [vmem:[%s428] sm:$0xff]
      %v472 = vpack.c.bf16 %v470, %v470
      %v473 = vpack.c.bf16 %v471, %v471
      %vm474 = vcmask 64512
      %v476 = vsel %vm474, %v439, 0
      %vm478 = vcmask 1043456
      %v480 = vsel %vm478, %v473, 0
      %482 = vmatprep.subr.bf16.mxu0 0
      %483 = vmatpush1.bf16.msra.mxu0 0
      %484 = vmatprep.subr.bf16.mxu0 0
      %485 = vmatpush1.bf16.msra.mxu0 0
      %486 = vmatprep.subr.bf16.mxu0 0
      %487 = vmatpush1.bf16.msra.mxu0 0
      %488 = vmatprep.subr.bf16.mxu0 0
      %489 = vmatpush1.bf16.msra.mxu0 0
      %490 = vmatprep.subr.bf16.mxu0 0
      %491 = vmatpush1.bf16.msra.mxu0 0
      %492 = vmatprep.subr.bf16.mxu0 0
      %493 = vmatpush1.bf16.msra.mxu0 0
      %494 = vmatprep.subr.bf16.mxu0 0
      %495 = vmatpush1.bf16.msra.mxu0 0
      %496 = vmatprep.subr.bf16.mxu0 0
      %497 = vmatpush1.bf16.msra.mxu0 %v480
      %498 = vmatprep.subr.bf16.mxu0 0
      %499 = vmatpush2.bf16.msra.mxu0 0
      %500 = vmatprep.subr.bf16.mxu0 0
      %501 = vmatpush2.bf16.msra.mxu0 0
      %502 = vmatprep.subr.bf16.mxu0 0
      %503 = vmatpush2.bf16.msra.mxu0 0
      %504 = vmatprep.subr.bf16.mxu0 0
      %505 = vmatpush2.bf16.msra.mxu0 0
      %506 = vmatprep.subr.bf16.mxu0 0
      %507 = vmatpush2.bf16.msra.mxu0 0
      %508 = vmatprep.subr.bf16.mxu0 0
      %509 = vmatpush2.bf16.msra.mxu0 0
      %510 = vmatprep.subr.bf16.mxu0 0
      %511 = vmatpush2.bf16.msra.mxu0 0
      %512 = vmatprep.subr.bf16.mxu0 0
      %513 = vmatpush2.bf16.msra.mxu0 0
      %514 = vmatprep.mubr.bf16.mxu0 0
      %515 = vmatmul.mubr.bf16.gmra.mxu0 %v476
      %v516 = vpop.f32.mrf.mxu0
      %v517 = vadd.f32 0.0, %v516
      %v518 = vpop.f32.mrf.mxu0
      %v519 = vpop.f32.mrf.mxu0
      %v520 = vpop.f32.mrf.mxu0
      %521 = vdwg.mxu0
      %v523 = vsel %vm474, %v437, 0
      %v526 = vsel %vm478, %v472, 0
      %528 = vmatprep.subr.bf16.mxu0 0
      %529 = vmatpush1.bf16.msra.mxu0 0
      %530 = vmatprep.subr.bf16.mxu0 0
      %531 = vmatpush1.bf16.msra.mxu0 0
      %532 = vmatprep.subr.bf16.mxu0 0
      %533 = vmatpush1.bf16.msra.mxu0 0
      %534 = vmatprep.subr.bf16.mxu0 0
      %535 = vmatpush1.bf16.msra.mxu0 0
      %536 = vmatprep.subr.bf16.mxu0 0
      %537 = vmatpush1.bf16.msra.mxu0 0
      %538 = vmatprep.subr.bf16.mxu0 0
      %539 = vmatpush1.bf16.msra.mxu0 0
      %540 = vmatprep.subr.bf16.mxu0 0
      %541 = vmatpush1.bf16.msra.mxu0 0
      %542 = vmatprep.subr.bf16.mxu0 0
      %543 = vmatpush1.bf16.msra.mxu0 %v526
      %544 = vmatprep.subr.bf16.mxu0 0
      %545 = vmatpush2.bf16.msra.mxu0 0
      %546 = vmatprep.subr.bf16.mxu0 0
      %547 = vmatpush2.bf16.msra.mxu0 0
      %548 = vmatprep.subr.bf16.mxu0 0
      %549 = vmatpush2.bf16.msra.mxu0 0
      %550 = vmatprep.subr.bf16.mxu0 0
      %551 = vmatpush2.bf16.msra.mxu0 0
      %552 = vmatprep.subr.bf16.mxu0 0
      %553 = vmatpush2.bf16.msra.mxu0 0
      %554 = vmatprep.subr.bf16.mxu0 0
      %555 = vmatpush2.bf16.msra.mxu0 0
      %556 = vmatprep.subr.bf16.mxu0 0
      %557 = vmatpush2.bf16.msra.mxu0 0
      %558 = vmatprep.subr.bf16.mxu0 0
      %559 = vmatpush2.bf16.msra.mxu0 0
      %560 = vmatprep.mubr.bf16.mxu0 0
      %561 = vmatmul.mubr.bf16.gmra.mxu0 %v523
      %v562 = vpop.f32.mrf.mxu0
      %v563 = vadd.f32 %v517, %v562
      %v564 = vpop.f32.mrf.mxu0
      %v565 = vpop.f32.mrf.mxu0
      %v566 = vpop.f32.mrf.mxu0
      %567 = vdwg.mxu0
      %v569 = vsel %vm474, %v443, 0
      %571 = vmatprep.subr.bf16.mxu0 0
      %572 = vmatpush1.bf16.msra.mxu0 0
      %573 = vmatprep.subr.bf16.mxu0 0
      %574 = vmatpush1.bf16.msra.mxu0 0
      %575 = vmatprep.subr.bf16.mxu0 0
      %576 = vmatpush1.bf16.msra.mxu0 0
      %577 = vmatprep.subr.bf16.mxu0 0
      %578 = vmatpush1.bf16.msra.mxu0 0
      %579 = vmatprep.subr.bf16.mxu0 0
      %580 = vmatpush1.bf16.msra.mxu0 0
      %581 = vmatprep.subr.bf16.mxu0 0
      %582 = vmatpush1.bf16.msra.mxu0 0
      %583 = vmatprep.subr.bf16.mxu0 0
      %584 = vmatpush1.bf16.msra.mxu0 0
      %585 = vmatprep.subr.bf16.mxu0 0
      %586 = vmatpush1.bf16.msra.mxu0 %v480
      %587 = vmatprep.subr.bf16.mxu0 0
      %588 = vmatpush2.bf16.msra.mxu0 0
      %589 = vmatprep.subr.bf16.mxu0 0
      %590 = vmatpush2.bf16.msra.mxu0 0
      %591 = vmatprep.subr.bf16.mxu0 0
      %592 = vmatpush2.bf16.msra.mxu0 0
      %593 = vmatprep.subr.bf16.mxu0 0
      %594 = vmatpush2.bf16.msra.mxu0 0
      %595 = vmatprep.subr.bf16.mxu0 0
      %596 = vmatpush2.bf16.msra.mxu0 0
      %597 = vmatprep.subr.bf16.mxu0 0
      %598 = vmatpush2.bf16.msra.mxu0 0
      %599 = vmatprep.subr.bf16.mxu0 0
      %600 = vmatpush2.bf16.msra.mxu0 0
      %601 = vmatprep.subr.bf16.mxu0 0
      %602 = vmatpush2.bf16.msra.mxu0 0
      %603 = vmatprep.mubr.bf16.mxu0 0
      %604 = vmatmul.mubr.bf16.gmra.mxu0 %v569
      %v605 = vpop.f32.mrf.mxu0
      %v606 = vadd.f32 0.0, %v605
      %v607 = vpop.f32.mrf.mxu0
      %v608 = vpop.f32.mrf.mxu0
      %v609 = vpop.f32.mrf.mxu0
      %610 = vdwg.mxu0
      %v612 = vsel %vm474, %v441, 0
      %614 = vmatprep.subr.bf16.mxu0 0
      %615 = vmatpush1.bf16.msra.mxu0 0
      %616 = vmatprep.subr.bf16.mxu0 0
      %617 = vmatpush1.bf16.msra.mxu0 0
      %618 = vmatprep.subr.bf16.mxu0 0
      %619 = vmatpush1.bf16.msra.mxu0 0
      %620 = vmatprep.subr.bf16.mxu0 0
      %621 = vmatpush1.bf16.msra.mxu0 0
      %622 = vmatprep.subr.bf16.mxu0 0
      %623 = vmatpush1.bf16.msra.mxu0 0
      %624 = vmatprep.subr.bf16.mxu0 0
      %625 = vmatpush1.bf16.msra.mxu0 0
      %626 = vmatprep.subr.bf16.mxu0 0
      %627 = vmatpush1.bf16.msra.mxu0 0
      %628 = vmatprep.subr.bf16.mxu0 0
      %629 = vmatpush1.bf16.msra.mxu0 %v526
      %630 = vmatprep.subr.bf16.mxu0 0
      %631 = vmatpush2.bf16.msra.mxu0 0
      %632 = vmatprep.subr.bf16.mxu0 0
      %633 = vmatpush2.bf16.msra.mxu0 0
      %634 = vmatprep.subr.bf16.mxu0 0
      %635 = vmatpush2.bf16.msra.mxu0 0
      %636 = vmatprep.subr.bf16.mxu0 0
      %637 = vmatpush2.bf16.msra.mxu0 0
      %638 = vmatprep.subr.bf16.mxu0 0
      %639 = vmatpush2.bf16.msra.mxu0 0
      %640 = vmatprep.subr.bf16.mxu0 0
      %641 = vmatpush2.bf16.msra.mxu0 0
      %642 = vmatprep.subr.bf16.mxu0 0
      %643 = vmatpush2.bf16.msra.mxu0 0
      %644 = vmatprep.subr.bf16.mxu0 0
      %645 = vmatpush2.bf16.msra.mxu0 0
      %646 = vmatprep.mubr.bf16.mxu0 0
      %647 = vmatmul.mubr.bf16.gmra.mxu0 %v612
      %v648 = vpop.f32.mrf.mxu0
      %v649 = vadd.f32 %v606, %v648
      %v650 = vpop.f32.mrf.mxu0
      %v651 = vpop.f32.mrf.mxu0
      %v652 = vpop.f32.mrf.mxu0
      %653 = vdwg.mxu0
      %655 = vset.pattern.permute.xlu0 0
      %656 = vperm.xlu0 %655, %v452
      %v657 = vpop.permute.xlu0 %656
      %v660 = vlaneseq
      %v661 = vshrl.u32 %v660, 7
      %v662 = vsub.s32 0, %v661
      %v663 = vrot.slane %v458, %v662
      %v665 = vmul.f32 %v657, %v663
      %v666 = vpack.c.bf16 %v563, %v563
      %v671 = vunpack.c.l.b16 %v459
      %v672 = vunpack.c.l.b16 %v460
      %v673 = vunpack.c.l.b16 %v461
      %v674 = vunpack.c.l.b16 %v462
      %v675 = vpack.c.b16 %v672, %v671
      %v676 = vpack.c.b16 %v674, %v673
      %vm679 = vcmask 261120
      %v681 = vsel %vm679, %v666, 0
      %683 = vmatprep.subr.bf16.mxu0 0
      %684 = vmatpush1.bf16.msra.mxu0 0
      %685 = vmatprep.subr.bf16.mxu0 0
      %686 = vmatpush1.bf16.msra.mxu0 0
      %687 = vmatprep.subr.bf16.mxu0 0
      %688 = vmatpush1.bf16.msra.mxu0 0
      %689 = vmatprep.subr.bf16.mxu0 0
      %690 = vmatpush1.bf16.msra.mxu0 0
      %691 = vmatprep.subr.bf16.mxu0 0
      %692 = vmatpush1.bf16.msra.mxu0 0
      %693 = vmatprep.subr.bf16.mxu0 0
      %694 = vmatpush1.bf16.msra.mxu0 0
      %695 = vmatprep.subr.bf16.mxu0 0
      %696 = vmatpush1.bf16.msra.mxu0 %v676
      %697 = vmatprep.subr.bf16.mxu0 0
      %698 = vmatpush1.bf16.msra.mxu0 %v675
      %699 = vmatprep.subr.bf16.mxu0 0
      %700 = vmatpush2.bf16.msra.mxu0 0
      %701 = vmatprep.subr.bf16.mxu0 0
      %702 = vmatpush2.bf16.msra.mxu0 0
      %703 = vmatprep.subr.bf16.mxu0 0
      %704 = vmatpush2.bf16.msra.mxu0 0
      %705 = vmatprep.subr.bf16.mxu0 0
      %706 = vmatpush2.bf16.msra.mxu0 0
      %707 = vmatprep.subr.bf16.mxu0 0
      %708 = vmatpush2.bf16.msra.mxu0 0
      %709 = vmatprep.subr.bf16.mxu0 0
      %710 = vmatpush2.bf16.msra.mxu0 0
      %711 = vmatprep.subr.bf16.mxu0 0
      %712 = vmatpush2.bf16.msra.mxu0 0
      %713 = vmatprep.subr.bf16.mxu0 0
      %714 = vmatpush2.bf16.msra.mxu0 0
      %715 = vmatprep.mubr.bf16.mxu0 0
      %716 = vmatmul.mubr.bf16.gmra.mxu0 %v681
      %v717 = vpop.f32.mrf.mxu0
      %v718 = vadd.f32 0.0, %v717
      %v719 = vpop.f32.mrf.mxu0
      %v720 = vpop.f32.mrf.mxu0
      %v721 = vpop.f32.mrf.mxu0
      %722 = vdwg.mxu0
      %v723 = vadd.f32 %v665, %v718
      %v725 = vlaneseq
      %v726 = vshrl.u32 %v725, 7
      %v727 = vsub.s32 0, %v726
      %v728 = vrot.slane %v463, %v727
      %v730 = vadd.f32 %v723, %v728
      %732 = vset.pattern.permute.xlu0 0
      %733 = vperm.xlu0 %732, %v454
      %v734 = vpop.permute.xlu0 %733
      %v736 = vmul.f32 %v734, %v663
      %v737 = vpack.c.bf16 %v649, %v649
      %v739 = vsel %vm679, %v737, 0
      %741 = vmatprep.subr.bf16.mxu0 0
      %742 = vmatpush1.bf16.msra.mxu0 0
      %743 = vmatprep.subr.bf16.mxu0 0
      %744 = vmatpush1.bf16.msra.mxu0 0
      %745 = vmatprep.subr.bf16.mxu0 0
      %746 = vmatpush1.bf16.msra.mxu0 0
      %747 = vmatprep.subr.bf16.mxu0 0
      %748 = vmatpush1.bf16.msra.mxu0 0
      %749 = vmatprep.subr.bf16.mxu0 0
      %750 = vmatpush1.bf16.msra.mxu0 0
      %751 = vmatprep.subr.bf16.mxu0 0
      %752 = vmatpush1.bf16.msra.mxu0 0
      %753 = vmatprep.subr.bf16.mxu0 0
      %754 = vmatpush1.bf16.msra.mxu0 %v676
      %755 = vmatprep.subr.bf16.mxu0 0
      %756 = vmatpush1.bf16.msra.mxu0 %v675
      %757 = vmatprep.subr.bf16.mxu0 0
      %758 = vmatpush2.bf16.msra.mxu0 0
      %759 = vmatprep.subr.bf16.mxu0 0
      %760 = vmatpush2.bf16.msra.mxu0 0
      %761 = vmatprep.subr.bf16.mxu0 0
      %762 = vmatpush2.bf16.msra.mxu0 0
      %763 = vmatprep.subr.bf16.mxu0 0
      %764 = vmatpush2.bf16.msra.mxu0 0
      %765 = vmatprep.subr.bf16.mxu0 0
      %766 = vmatpush2.bf16.msra.mxu0 0
      %767 = vmatprep.subr.bf16.mxu0 0
      %768 = vmatpush2.bf16.msra.mxu0 0
      %769 = vmatprep.subr.bf16.mxu0 0
      %770 = vmatpush2.bf16.msra.mxu0 0
      %771 = vmatprep.subr.bf16.mxu0 0
      %772 = vmatpush2.bf16.msra.mxu0 0
      %773 = vmatprep.mubr.bf16.mxu0 0
      %774 = vmatmul.mubr.bf16.gmra.mxu0 %v739
      %v775 = vpop.f32.mrf.mxu0
      %v776 = vadd.f32 0.0, %v775
      %v777 = vpop.f32.mrf.mxu0
      %v778 = vpop.f32.mrf.mxu0
      %v779 = vpop.f32.mrf.mxu0
      %780 = vdwg.mxu0
      %v781 = vadd.f32 %v736, %v776
      %v782 = vadd.f32 %v781, %v728
      %v783 = vmul.f32 %v730, 0.5
      %v784 = vtanh.pop %v783
      %v785 = vadd.f32 %v784, 1.0
      %v786 = vmul.f32 %v785, 0.5
      %v787 = vmul.f32 %v782, 0.5
      %v788 = vtanh.pop %v787
      %v789 = vadd.f32 %v788, 1.0
      %v790 = vmul.f32 %v789, 0.5
      %v791 = vmul.f32 %v786, %v470
      %v792 = vpack.c.bf16 %v791, %v791
      %vm793 = vcmask 257024
      %794 = vst.msk [vmem:[#allocation2] sm:$0xf] %vm793, %v792
      %796 = vrot.lane.b32.xlu0 %v471, 32
      %v797 = vpop.permute.xlu0 %796
      %v799 = vmul.f32 %v786, %v797
      %v800 = vpack.c.bf16 %v799, %v799
      %v802 = vunpack.c.l.b16 %v800
      %v803 = vpack.c.b16 %v802, %v802
      %804 = vrot.lane.b32.xlu0 %v803, 96
      %v805 = vpop.permute.xlu0 %804
      %807 = vst.msk [vmem:[#allocation3] sm:$0xf] %vm793, %v805
      %v808 = vld [vmem:[#allocation2] sm:$0xf]
      %v809 = vld [vmem:[#allocation3] sm:$0xf]
      %v811 = vsel %vm474, %v447, 0
      %v814 = vsel %vm478, %v809, 0
      %816 = vmatprep.subr.bf16.mxu0 0
      %817 = vmatpush1.bf16.msra.mxu0 0
      %818 = vmatprep.subr.bf16.mxu0 0
      %819 = vmatpush1.bf16.msra.mxu0 0
      %820 = vmatprep.subr.bf16.mxu0 0
      %821 = vmatpush1.bf16.msra.mxu0 0
      %822 = vmatprep.subr.bf16.mxu0 0
      %823 = vmatpush1.bf16.msra.mxu0 0
      %824 = vmatprep.subr.bf16.mxu0 0
      %825 = vmatpush1.bf16.msra.mxu0 0
      %826 = vmatprep.subr.bf16.mxu0 0
      %827 = vmatpush1.bf16.msra.mxu0 0
      %828 = vmatprep.subr.bf16.mxu0 0
      %829 = vmatpush1.bf16.msra.mxu0 0
      %830 = vmatprep.subr.bf16.mxu0 0
      %831 = vmatpush1.bf16.msra.mxu0 %v814
      %832 = vmatprep.subr.bf16.mxu0 0
      %833 = vmatpush2.bf16.msra.mxu0 0
      %834 = vmatprep.subr.bf16.mxu0 0
      %835 = vmatpush2.bf16.msra.mxu0 0
      %836 = vmatprep.subr.bf16.mxu0 0
      %837 = vmatpush2.bf16.msra.mxu0 0
      %838 = vmatprep.subr.bf16.mxu0 0
      %839 = vmatpush2.bf16.msra.mxu0 0
      %840 = vmatprep.subr.bf16.mxu0 0
      %841 = vmatpush2.bf16.msra.mxu0 0
      %842 = vmatprep.subr.bf16.mxu0 0
      %843 = vmatpush2.bf16.msra.mxu0 0
      %844 = vmatprep.subr.bf16.mxu0 0
      %845 = vmatpush2.bf16.msra.mxu0 0
      %846 = vmatprep.subr.bf16.mxu0 0
      %847 = vmatpush2.bf16.msra.mxu0 0
      %848 = vmatprep.mubr.bf16.mxu0 0
      %849 = vmatmul.mubr.bf16.gmra.mxu0 %v811
      %v850 = vpop.f32.mrf.mxu0
      %v851 = vadd.f32 0.0, %v850
      %v852 = vpop.f32.mrf.mxu0
      %v853 = vpop.f32.mrf.mxu0
      %v854 = vpop.f32.mrf.mxu0
      %855 = vdwg.mxu0
      %v857 = vsel %vm474, %v445, 0
      %v860 = vsel %vm478, %v808, 0
      %862 = vmatprep.subr.bf16.mxu0 0
      %863 = vmatpush1.bf16.msra.mxu0 0
      %864 = vmatprep.subr.bf16.mxu0 0
      %865 = vmatpush1.bf16.msra.mxu0 0
      %866 = vmatprep.subr.bf16.mxu0 0
      %867 = vmatpush1.bf16.msra.mxu0 0
      %868 = vmatprep.subr.bf16.mxu0 0
      %869 = vmatpush1.bf16.msra.mxu0 0
      %870 = vmatprep.subr.bf16.mxu0 0
      %871 = vmatpush1.bf16.msra.mxu0 0
      %872 = vmatprep.subr.bf16.mxu0 0
      %873 = vmatpush1.bf16.msra.mxu0 0
      %874 = vmatprep.subr.bf16.mxu0 0
      %875 = vmatpush1.bf16.msra.mxu0 0
      %876 = vmatprep.subr.bf16.mxu0 0
      %877 = vmatpush1.bf16.msra.mxu0 %v860
      %878 = vmatprep.subr.bf16.mxu0 0
      %879 = vmatpush2.bf16.msra.mxu0 0
      %880 = vmatprep.subr.bf16.mxu0 0
      %881 = vmatpush2.bf16.msra.mxu0 0
      %882 = vmatprep.subr.bf16.mxu0 0
      %883 = vmatpush2.bf16.msra.mxu0 0
      %884 = vmatprep.subr.bf16.mxu0 0
      %885 = vmatpush2.bf16.msra.mxu0 0
      %886 = vmatprep.subr.bf16.mxu0 0
      %887 = vmatpush2.bf16.msra.mxu0 0
      %888 = vmatprep.subr.bf16.mxu0 0
      %889 = vmatpush2.bf16.msra.mxu0 0
      %890 = vmatprep.subr.bf16.mxu0 0
      %891 = vmatpush2.bf16.msra.mxu0 0
      %892 = vmatprep.subr.bf16.mxu0 0
      %893 = vmatpush2.bf16.msra.mxu0 0
      %894 = vmatprep.mubr.bf16.mxu0 0
      %895 = vmatmul.mubr.bf16.gmra.mxu0 %v857
      %v896 = vpop.f32.mrf.mxu0
      %v897 = vadd.f32 %v851, %v896
      %v898 = vpop.f32.mrf.mxu0
      %v899 = vpop.f32.mrf.mxu0
      %v900 = vpop.f32.mrf.mxu0
      %901 = vdwg.mxu0
      %v903 = vsel %vm474, %v451, 0
      %905 = vmatprep.subr.bf16.mxu0 0
      %906 = vmatpush1.bf16.msra.mxu0 0
      %907 = vmatprep.subr.bf16.mxu0 0
      %908 = vmatpush1.bf16.msra.mxu0 0
      %909 = vmatprep.subr.bf16.mxu0 0
      %910 = vmatpush1.bf16.msra.mxu0 0
      %911 = vmatprep.subr.bf16.mxu0 0
      %912 = vmatpush1.bf16.msra.mxu0 0
      %913 = vmatprep.subr.bf16.mxu0 0
      %914 = vmatpush1.bf16.msra.mxu0 0
      %915 = vmatprep.subr.bf16.mxu0 0
      %916 = vmatpush1.bf16.msra.mxu0 0
      %917 = vmatprep.subr.bf16.mxu0 0
      %918 = vmatpush1.bf16.msra.mxu0 0
      %919 = vmatprep.subr.bf16.mxu0 0
      %920 = vmatpush1.bf16.msra.mxu0 %v814
      %921 = vmatprep.subr.bf16.mxu0 0
      %922 = vmatpush2.bf16.msra.mxu0 0
      %923 = vmatprep.subr.bf16.mxu0 0
      %924 = vmatpush2.bf16.msra.mxu0 0
      %925 = vmatprep.subr.bf16.mxu0 0
      %926 = vmatpush2.bf16.msra.mxu0 0
      %927 = vmatprep.subr.bf16.mxu0 0
      %928 = vmatpush2.bf16.msra.mxu0 0
      %929 = vmatprep.subr.bf16.mxu0 0
      %930 = vmatpush2.bf16.msra.mxu0 0
      %931 = vmatprep.subr.bf16.mxu0 0
      %932 = vmatpush2.bf16.msra.mxu0 0
      %933 = vmatprep.subr.bf16.mxu0 0
      %934 = vmatpush2.bf16.msra.mxu0 0
      %935 = vmatprep.subr.bf16.mxu0 0
      %936 = vmatpush2.bf16.msra.mxu0 0
      %937 = vmatprep.mubr.bf16.mxu0 0
      %938 = vmatmul.mubr.bf16.gmra.mxu0 %v903
      %v939 = vpop.f32.mrf.mxu0
      %v940 = vadd.f32 0.0, %v939
      %v941 = vpop.f32.mrf.mxu0
      %v942 = vpop.f32.mrf.mxu0
      %v943 = vpop.f32.mrf.mxu0
      %944 = vdwg.mxu0
      %v946 = vsel %vm474, %v449, 0
      %948 = vmatprep.subr.bf16.mxu0 0
      %949 = vmatpush1.bf16.msra.mxu0 0
      %950 = vmatprep.subr.bf16.mxu0 0
      %951 = vmatpush1.bf16.msra.mxu0 0
      %952 = vmatprep.subr.bf16.mxu0 0
      %953 = vmatpush1.bf16.msra.mxu0 0
      %954 = vmatprep.subr.bf16.mxu0 0
      %955 = vmatpush1.bf16.msra.mxu0 0
      %956 = vmatprep.subr.bf16.mxu0 0
      %957 = vmatpush1.bf16.msra.mxu0 0
      %958 = vmatprep.subr.bf16.mxu0 0
      %959 = vmatpush1.bf16.msra.mxu0 0
      %960 = vmatprep.subr.bf16.mxu0 0
      %961 = vmatpush1.bf16.msra.mxu0 0
      %962 = vmatprep.subr.bf16.mxu0 0
      %963 = vmatpush1.bf16.msra.mxu0 %v860
      %964 = vmatprep.subr.bf16.mxu0 0
      %965 = vmatpush2.bf16.msra.mxu0 0
      %966 = vmatprep.subr.bf16.mxu0 0
      %967 = vmatpush2.bf16.msra.mxu0 0
      %968 = vmatprep.subr.bf16.mxu0 0
      %969 = vmatpush2.bf16.msra.mxu0 0
      %970 = vmatprep.subr.bf16.mxu0 0
      %971 = vmatpush2.bf16.msra.mxu0 0
      %972 = vmatprep.subr.bf16.mxu0 0
      %973 = vmatpush2.bf16.msra.mxu0 0
      %974 = vmatprep.subr.bf16.mxu0 0
      %975 = vmatpush2.bf16.msra.mxu0 0
      %976 = vmatprep.subr.bf16.mxu0 0
      %977 = vmatpush2.bf16.msra.mxu0 0
      %978 = vmatprep.subr.bf16.mxu0 0
      %979 = vmatpush2.bf16.msra.mxu0 0
      %980 = vmatprep.mubr.bf16.mxu0 0
      %981 = vmatmul.mubr.bf16.gmra.mxu0 %v946
      %v982 = vpop.f32.mrf.mxu0
      %v983 = vadd.f32 %v940, %v982
      %v984 = vpop.f32.mrf.mxu0
      %v985 = vpop.f32.mrf.mxu0
      %v986 = vpop.f32.mrf.mxu0
      %987 = vdwg.mxu0
      %989 = vset.pattern.permute.xlu0 0
      %990 = vperm.xlu0 %989, %v455
      %v991 = vpop.permute.xlu0 %990
      %v994 = vlaneseq
      %v995 = vshrl.u32 %v994, 7
      %v996 = vsub.s32 0, %v995
      %v997 = vrot.slane %v464, %v996
      %v999 = vmul.f32 %v991, %v997
      %v1000 = vpack.c.bf16 %v897, %v897
      %v1005 = vunpack.c.l.b16 %v465
      %v1006 = vunpack.c.l.b16 %v466
      %v1007 = vunpack.c.l.b16 %v467
      %v1008 = vunpack.c.l.b16 %v468
      %v1009 = vpack.c.b16 %v1006, %v1005
      %v1010 = vpack.c.b16 %v1008, %v1007
      %v1014 = vsel %vm679, %v1000, 0
      %1016 = vmatprep.subr.bf16.mxu0 0
      %1017 = vmatpush1.bf16.msra.mxu0 0
      %1018 = vmatprep.subr.bf16.mxu0 0
      %1019 = vmatpush1.bf16.msra.mxu0 0
      %1020 = vmatprep.subr.bf16.mxu0 0
      %1021 = vmatpush1.bf16.msra.mxu0 0
      %1022 = vmatprep.subr.bf16.mxu0 0
      %1023 = vmatpush1.bf16.msra.mxu0 0
      %1024 = vmatprep.subr.bf16.mxu0 0
      %1025 = vmatpush1.bf16.msra.mxu0 0
      %1026 = vmatprep.subr.bf16.mxu0 0
      %1027 = vmatpush1.bf16.msra.mxu0 0
      %1028 = vmatprep.subr.bf16.mxu0 0
      %1029 = vmatpush1.bf16.msra.mxu0 %v1010
      %1030 = vmatprep.subr.bf16.mxu0 0
      %1031 = vmatpush1.bf16.msra.mxu0 %v1009
      %1032 = vmatprep.subr.bf16.mxu0 0
      %1033 = vmatpush2.bf16.msra.mxu0 0
      %1034 = vmatprep.subr.bf16.mxu0 0
      %1035 = vmatpush2.bf16.msra.mxu0 0
      %1036 = vmatprep.subr.bf16.mxu0 0
      %1037 = vmatpush2.bf16.msra.mxu0 0
      %1038 = vmatprep.subr.bf16.mxu0 0
      %1039 = vmatpush2.bf16.msra.mxu0 0
      %1040 = vmatprep.subr.bf16.mxu0 0
      %1041 = vmatpush2.bf16.msra.mxu0 0
      %1042 = vmatprep.subr.bf16.mxu0 0
      %1043 = vmatpush2.bf16.msra.mxu0 0
      %1044 = vmatprep.subr.bf16.mxu0 0
      %1045 = vmatpush2.bf16.msra.mxu0 0
      %1046 = vmatprep.subr.bf16.mxu0 0
      %1047 = vmatpush2.bf16.msra.mxu0 0
      %1048 = vmatprep.mubr.bf16.mxu0 0
      %1049 = vmatmul.mubr.bf16.gmra.mxu0 %v1014
      %v1050 = vpop.f32.mrf.mxu0
      %v1051 = vadd.f32 0.0, %v1050
      %v1052 = vpop.f32.mrf.mxu0
      %v1053 = vpop.f32.mrf.mxu0
      %v1054 = vpop.f32.mrf.mxu0
      %1055 = vdwg.mxu0
      %v1056 = vadd.f32 %v999, %v1051
      %v1058 = vlaneseq
      %v1059 = vshrl.u32 %v1058, 7
      %v1060 = vsub.s32 0, %v1059
      %v1061 = vrot.slane %v469, %v1060
      %v1063 = vadd.f32 %v1056, %v1061
      %v1064 = vtanh.pop %v1063
      %1066 = vset.pattern.permute.xlu0 0
      %1067 = vperm.xlu0 %1066, %v457
      %v1068 = vpop.permute.xlu0 %1067
      %v1070 = vmul.f32 %v1068, %v997
      %v1071 = vpack.c.bf16 %v983, %v983
      %v1073 = vsel %vm679, %v1071, 0
      %1075 = vmatprep.subr.bf16.mxu0 0
      %1076 = vmatpush1.bf16.msra.mxu0 0
      %1077 = vmatprep.subr.bf16.mxu0 0
      %1078 = vmatpush1.bf16.msra.mxu0 0
      %1079 = vmatprep.subr.bf16.mxu0 0
      %1080 = vmatpush1.bf16.msra.mxu0 0
      %1081 = vmatprep.subr.bf16.mxu0 0
      %1082 = vmatpush1.bf16.msra.mxu0 0
      %1083 = vmatprep.subr.bf16.mxu0 0
      %1084 = vmatpush1.bf16.msra.mxu0 0
      %1085 = vmatprep.subr.bf16.mxu0 0
      %1086 = vmatpush1.bf16.msra.mxu0 0
      %1087 = vmatprep.subr.bf16.mxu0 0
      %1088 = vmatpush1.bf16.msra.mxu0 %v1010
      %1089 = vmatprep.subr.bf16.mxu0 0
      %1090 = vmatpush1.bf16.msra.mxu0 %v1009
      %1091 = vmatprep.subr.bf16.mxu0 0
      %1092 = vmatpush2.bf16.msra.mxu0 0
      %1093 = vmatprep.subr.bf16.mxu0 0
      %1094 = vmatpush2.bf16.msra.mxu0 0
      %1095 = vmatprep.subr.bf16.mxu0 0
      %1096 = vmatpush2.bf16.msra.mxu0 0
      %1097 = vmatprep.subr.bf16.mxu0 0
      %1098 = vmatpush2.bf16.msra.mxu0 0
      %1099 = vmatprep.subr.bf16.mxu0 0
      %1100 = vmatpush2.bf16.msra.mxu0 0
      %1101 = vmatprep.subr.bf16.mxu0 0
      %1102 = vmatpush2.bf16.msra.mxu0 0
      %1103 = vmatprep.subr.bf16.mxu0 0
      %1104 = vmatpush2.bf16.msra.mxu0 0
      %1105 = vmatprep.subr.bf16.mxu0 0
      %1106 = vmatpush2.bf16.msra.mxu0 0
      %1107 = vmatprep.mubr.bf16.mxu0 0
      %1108 = vmatmul.mubr.bf16.gmra.mxu0 %v1073
      %v1109 = vpop.f32.mrf.mxu0
      %v1110 = vadd.f32 0.0, %v1109
      %v1111 = vpop.f32.mrf.mxu0
      %v1112 = vpop.f32.mrf.mxu0
      %v1113 = vpop.f32.mrf.mxu0
      %1114 = vdwg.mxu0
      %v1115 = vadd.f32 %v1070, %v1110
      %v1116 = vadd.f32 %v1115, %v1061
      %v1117 = vtanh.pop %v1116
      %v1118 = vmul.f32 %v790, %v470
      %v1119 = vsub.f32 1.0, %v790
      %v1120 = vmul.f32 %v1119, %v1064
      %v1121 = vadd.f32 %v1118, %v1120
      %1122 = vst.msk [vmem:[%s424] sm:$0xff] %vm679, %v1121
      %v1123 = vmul.f32 %v790, %v797
      %1125 = vrot.lane.b32.xlu0 %v1117, 32
      %v1126 = vpop.permute.xlu0 %1125
      %v1128 = vmul.f32 %v1119, %v1126
      %v1129 = vadd.f32 %v1123, %v1128
      %1131 = vrot.lane.b32.xlu0 %v1129, 96
      %v1132 = vpop.permute.xlu0 %1131
      %1134 = vst.msk [vmem:[%s428] sm:$0xff] %vm679, %v1132
      %p1135 = scmp.lt.s32.totalorder %s26, 1
      %s1136 = scalar_select %p1135, %s26, 1
      %s1137 = smul.addr %s1136, 8
      %s1138 = scalar_lea.vmem %s9, %s1137
      %p1139 = scmp.lt.s32.totalorder %s26, 1
      %s1140 = scalar_select %p1139, %s26, 1
      %s1141 = smul.addr %s1140, 8
      %s1142 = scalar_lea.vmem %s10, %s1141
      // Predicated region
      $region61: #{tgcn_forward.1} parent=55 // pred_check
        %p1143 = pneg %p255
      $region62: #{tgcn_forward.1} parent=55 // pred_check_branch
        %1145 = sbr.rel (%p1143) target = $region64
      $region63: #{tgcn_forward.1} parent=55 // pred_region
        _
      $region64: #{tgcn_forward.1} parent=55 // pred_fallthru
        _
      // Predicated region
      $region65: #{tgcn_forward.1} parent=55 // pred_check
        %p1146 = pneg %p281
      $region66: #{tgcn_forward.1} parent=55 // pred_check_branch
        %1148 = sbr.rel (%p1146) target = $region68
      $region67: #{tgcn_forward.1} parent=55 // pred_region
        _
      $region68: #{tgcn_forward.1} parent=55 // pred_fallthru
        _
    $region56: #{tgcn_forward.1} parent=5 // pred_fallthru
      _
    %p1149 = scmp.le.s32.totalorder 2, %s17
    // Predicated region
    $region69: #{tgcn_forward.1} parent=5 // pred_check
      %p1150 = pneg %p1149
    $region70: #{tgcn_forward.1} parent=5 // pred_check_branch
      %1152 = sbr.rel (%p1150) target = $region72
    $region71: #{tgcn_forward.1} parent=5 // pred_region
      %s1153 = ssub.s32 %s17, 2
      // Predicated region
      $region73: #{tgcn_forward.1} parent=71 // pred_check
        %p1154 = pneg %p261
      $region74: #{tgcn_forward.1} parent=71 // pred_check_branch
        %1156 = sbr.rel (%p1154) target = $region76
      $region75: #{tgcn_forward.1} parent=71 // pred_region
        %p1157 = scmp.lt.s32.totalorder %s28, 1
        %s1158 = scalar_select %p1157, %s28, 1
        %s1159 = smul.addr %s1158, 8
        %s1160 = scalar_lea.vmem %s9, %s1159
      $region76: #{tgcn_forward.1} parent=71 // pred_fallthru
        _
      // Predicated region
      $region77: #{tgcn_forward.1} parent=71 // pred_check
        %p1161 = pneg %p287
      $region78: #{tgcn_forward.1} parent=71 // pred_check_branch
        %1163 = sbr.rel (%p1161) target = $region80
      $region79: #{tgcn_forward.1} parent=71 // pred_region
        %p1164 = scmp.lt.s32.totalorder %s28, 1
        %s1165 = scalar_select %p1164, %s28, 1
        %s1166 = smul.addr %s1165, 8
        %s1167 = scalar_lea.vmem %s10, %s1166
      $region80: #{tgcn_forward.1} parent=71 // pred_fallthru
        _
    $region72: #{tgcn_forward.1} parent=5 // pred_fallthru
      _
  $region6: #{tgcn_forward.1} parent=0 // loop_footer
    %s21 = sadd.s32 1, %s17
  $region7: #{tgcn_forward.1} parent=0 // loop_footer_branch
    %16 = sbr.rel target = $region3
  $region8: #{tgcn_forward.1} parent=0 // loop_exit
    _

</llo_original>
